<compile_context>
chip_gen: v7x
topology: tpu7x:2x2x1
jax: 0.10.0
libtpu: 0.0.40
codegen_flags: <defaults>
</compile_context>

<pallas_src>
import jax
import jax.numpy as jnp
from jax.experimental import pallas as pl
from jax.experimental.pallas import tpu as pltpu

EXPANSION = 4


# ---------------------------------------------------------------------------
# Tiling / budget helpers
# ---------------------------------------------------------------------------
def _vmem_budget_bytes():
    """VMEM budget per generation: ~3/4 of capacity (≈96 MiB on v5e/v6e's
    128 MiB, ≈48 MiB on v7x's 64 MiB per TensorCore)."""
    try:
        cap = int(pltpu.get_tpu_info().vmem_capacity_bytes)
    except Exception:
        cap = 64 * 1024 * 1024  # conservative fallback (v7x per-core VMEM)
    return min(int(cap) * 3 // 4, 96 * 1024 * 1024)


def _pick_batch_tile(N, H, W, Cin, P, Cout, vmem_limit, m_target=512):
    """Number of images per grid step: grow until the matmul M = NB*H*W is
    MXU-friendly, while fitting the VMEM budget and keeping >=2 grid steps
    (megacore split on v7x)."""
    # Conservative per-image working-set estimate (activations + intermediates).
    per_img = H * W * (54 * P + 16 * Cout + 4 * Cin)
    # Resident weights (bf16), assume double-buffered allocation.
    w_bytes = 4 * (Cin * P + 9 * P * P + P * Cout + Cin * Cout)
    budget = max(vmem_limit - w_bytes, per_img)

    nb = 1
    for cand in range(1, N + 1):
        if N % cand:
            continue
        if cand > 1 and cand * per_img > budget:
            break
        if N >= 2 and N // cand < 2:
            break  # keep at least 2 grid steps so both v7x TensorCores get work
        nb = cand
        if cand * H * W >= m_target:
            break
    return nb


# ---------------------------------------------------------------------------
# Kernel
# ---------------------------------------------------------------------------
def _make_kernel(NB, H, W, Cin, P, has_downsample):
    """Kernel body for fixed static shapes. One grid step = NB whole images."""
    Cout = EXPANSION * P
    M = NB * H * W

    def kernel(*refs):
        if has_downsample:
            (x_ref, w1_ref, b1_ref, w2_ref, b2_ref, w3_ref, b3_ref,
             wd_ref, bd_ref, out_ref) = refs
        else:
            (x_ref, w1_ref, b1_ref, w2_ref, b2_ref, w3_ref, b3_ref,
             out_ref) = refs

        xm = x_ref[...].reshape(M, Cin)                        # bf16, cast once in wrapper

        # ---- identity / downsample first (shortens x's live range) ---------
        if has_downsample:
            idn = jnp.dot(xm, wd_ref[...],
                          preferred_element_type=jnp.float32) + bd_ref[...]
        else:
            idn = xm                                           # Cin == Cout; promoted at the add

        # ---- conv1 (1x1, BN scale folded) + bias + relu ---------------------
        h1 = jnp.dot(xm, w1_ref[...], preferred_element_type=jnp.float32)
        h1 = jnp.maximum(h1 + b1_ref[...], 0.0).reshape(NB * H, W, P)

        # ---- conv2 (3x3, pad=1): dx taps via lane roll + edge mask, dy taps
        #      via row shift + mask, fused into ONE K=9P matmul ---------------
        col = jax.lax.broadcasted_iota(jnp.int32, (1, W, 1), 1)
        left = jnp.where(col == 0, 0.0,
                         pltpu.roll(h1, shift=1, axis=1))          # h1[., x-1]
        right = jnp.where(col == W - 1, 0.0,
                          pltpu.roll(h1, shift=W - 1, axis=1))     # h1[., x+1]
        cat_x = jnp.concatenate([left, h1, right],
                                axis=-1).astype(jnp.bfloat16)      # (NB*H, W, 3P)

        zrow = jnp.zeros((1, W, 3 * P), jnp.bfloat16)
        up = jnp.concatenate([zrow, cat_x[:NB * H - 1]], axis=0)   # row y holds cat_x[y-1]
        down = jnp.concatenate([cat_x[1:], zrow], axis=0)          # row y holds cat_x[y+1]
        if NB > 1:
            # Only needed when rows of multiple images share the flattened axis:
            # zero taps that would cross an image boundary.
            row = jax.lax.broadcasted_iota(jnp.int32, (NB * H, 1, 1), 0) % H
            up = jnp.where(row == 0, 0.0, up)
            down = jnp.where(row == H - 1, 0.0, down)
        cat9 = jnp.concatenate([up, cat_x, down], axis=-1)         # (NB*H, W, 9P) bf16

        h2 = jnp.dot(cat9.reshape(M, 9 * P), w2_ref[...],
                     preferred_element_type=jnp.float32)
        h2 = jnp.maximum(h2 + b2_ref[...], 0.0).astype(jnp.bfloat16)

        # ---- conv3 (1x1) + bias, residual add, relu -------------------------
        h3 = jnp.dot(h2, w3_ref[...],
                     preferred_element_type=jnp.float32) + b3_ref[...]
        out = jnp.maximum(h3 + idn, 0.0)
        out_ref[...] = out.astype(jnp.bfloat16).reshape(NB, H, W, Cout)

    return kernel


# ---------------------------------------------------------------------------
# Wrappers
# ---------------------------------------------------------------------------
def bottleneck_forward_nhwc(x_nhwc, params, *, downsample, batch_tile=None):
    """Run the Bottleneck block on NHWC input; returns NHWC bf16."""
    x = x_nhwc.astype(jnp.bfloat16)
    N, H, W, Cin = x.shape
    P = params["w1"].shape[1]
    Cout = EXPANSION * P
    if not downsample:
        assert Cin == Cout, "identity path requires inplanes == 4*planes"

    # Fold BN scales into the conv weights (biases stay separate); bf16 matmul
    # operands with f32 accumulation inside the kernel.
    w1c = (params["w1"] * params["s1"]).astype(jnp.bfloat16)                 # (Cin, P)
    # (3,3,P,P) * (1,P) scales output channels; flatten (ky,kx,ci) -> K=9P.
    w2c = (params["w2"] * params["s2"]).reshape(9 * P, P).astype(jnp.bfloat16)
    w3c = (params["w3"] * params["s3"]).astype(jnp.bfloat16)                 # (P, Cout)
    b1, b2, b3 = params["b1"], params["b2"], params["b3"]

    vmem_limit = _vmem_budget_bytes()
    NB = batch_tile if batch_tile is not None else _pick_batch_tile(
        N, H, W, Cin, P, Cout, vmem_limit)
    assert N % NB == 0

    args = [x, w1c, b1, w2c, b2, w3c, b3]
    in_specs = [
        pl.BlockSpec((NB, H, W, Cin), lambda n: (n, 0, 0, 0)),
        pl.BlockSpec((Cin, P), lambda n: (0, 0)),
        pl.BlockSpec((1, P), lambda n: (0, 0)),
        pl.BlockSpec((9 * P, P), lambda n: (0, 0)),
        pl.BlockSpec((1, P), lambda n: (0, 0)),
        pl.BlockSpec((P, Cout), lambda n: (0, 0)),
        pl.BlockSpec((1, Cout), lambda n: (0, 0)),
    ]
    if downsample:
        wdc = (params["wd"] * params["sd"]).astype(jnp.bfloat16)             # (Cin, Cout)
        args += [wdc, params["bd"]]
        in_specs += [
            pl.BlockSpec((Cin, Cout), lambda n: (0, 0)),
            pl.BlockSpec((1, Cout), lambda n: (0, 0)),
        ]

    kernel = _make_kernel(NB, H, W, Cin, P, downsample)

    return pl.pallas_call(
        kernel,
        grid=(N // NB,),
        in_specs=in_specs,
        out_specs=pl.BlockSpec((NB, H, W, Cout), lambda n: (n, 0, 0, 0)),
        out_shape=jax.ShapeDtypeStruct((N, H, W, Cout), jnp.bfloat16),
        compiler_params=pltpu.CompilerParams(
            dimension_semantics=("parallel",),
            vmem_limit_bytes=vmem_limit,
        ),
    )(*args)


def bottleneck_forward(x_nchw, params, *, downsample, batch_tile=None):
    """PyTorch-layout adapter: (N, Cin, H, W) in, (N, Cout, H, W) bf16 out."""
    # TODO(synk): drop this transpose by carrying NHWC/bf16 through the model.
    x_nhwc = jnp.transpose(x_nchw, (0, 2, 3, 1))
    out = bottleneck_forward_nhwc(x_nhwc, params, downsample=downsample,
                                  batch_tile=batch_tile)
    return jnp.transpose(out, (0, 3, 1, 2))


# ---------------------------------------------------------------------------
# Deterministic parameter construction (synthetic; no checkpoint load).
# ---------------------------------------------------------------------------
def _fold_bn(key, C):
    k1, k2, k3, k4 = jax.random.split(key, 4)
    gamma = jax.random.uniform(k1, (C,), jnp.float32, 0.5, 1.5)
    beta = jax.random.normal(k2, (C,), jnp.float32) * 0.1
    mean = jax.random.normal(k3, (C,), jnp.float32) * 0.1
    var = jax.random.uniform(k4, (C,), jnp.float32, 0.5, 1.5)
    eps = 1e-5
    scale = gamma / jnp.sqrt(var + eps)
    bias = beta - mean * scale
    return scale.reshape(1, C), bias.reshape(1, C)


def make_params(key, inplanes, planes, downsample):
    cout = EXPANSION * planes
    keys = jax.random.split(key, 8)
    p = {
        "w1": jax.random.normal(keys[0], (inplanes, planes), jnp.float32) * 0.1,
        "w2": jax.random.normal(keys[1], (3, 3, planes, planes), jnp.float32) * 0.1,
        "w3": jax.random.normal(keys[2], (planes, cout), jnp.float32) * 0.1,
    }
    p["s1"], p["b1"] = _fold_bn(keys[3], planes)
    p["s2"], p["b2"] = _fold_bn(keys[4], planes)
    p["s3"], p["b3"] = _fold_bn(keys[5], cout)
    if downsample:
        p["wd"] = jax.random.normal(keys[6], (inplanes, cout), jnp.float32) * 0.1
        p["sd"], p["bd"] = _fold_bn(keys[7], cout)
    return p


# ---------------------------------------------------------------------------
# Pure-JAX reference (lax conv, f32) for verification.
# ---------------------------------------------------------------------------
def reference_forward(x_nchw, params, *, downsample):
    x = jnp.transpose(x_nchw, (0, 2, 3, 1)).astype(jnp.float32)
    prec = jax.lax.Precision.HIGHEST

    def conv(inp, w_hwio, pad):
        return jax.lax.conv_general_dilated(
            inp, w_hwio, window_strides=(1, 1),
            padding=[(pad, pad), (pad, pad)],
            dimension_numbers=("NHWC", "HWIO", "NHWC"),
            precision=prec)

    h = conv(x, params["w1"][None, None], 0)
    h = jnp.maximum(h * params["s1"] + params["b1"], 0.0)
    h = conv(h, params["w2"], 1)
    h = jnp.maximum(h * params["s2"] + params["b2"], 0.0)
    h = conv(h, params["w3"][None, None], 0)
    h = h * params["s3"] + params["b3"]
    if downsample:
        idn = conv(x, params["wd"][None, None], 0)
        idn = idn * params["sd"] + params["bd"]
    else:
        idn = x
    out = jnp.maximum(h + idn, 0.0)
    return jnp.transpose(out, (0, 3, 1, 2))


if __name__ == "__main__":
    key = jax.random.PRNGKey(0)
    k_x1, k_p1, k_x2, k_p2 = jax.random.split(key, 4)

    # bf16 activations/weights (f32 accumulation) => looser tolerance vs f32 ref.
    ATOL = RTOL = 5e-2

    # Case 1: downsample=True (inplanes != 4*planes), stride=1.
    N, H, W = 2, 16, 16
    inplanes, planes = 16, 8
    x1 = jax.random.normal(k_x1, (N, inplanes, H, W), jnp.float32)
    p1 = make_params(k_p1, inplanes, planes, downsample=True)
    out1 = bottleneck_forward(x1, p1, downsample=True)
    jax.block_until_ready(out1)
    ref1 = reference_forward(x1, p1, downsample=True)
    assert out1.shape == (N, EXPANSION * planes, H, W)
    assert jnp.allclose(out1.astype(jnp.float32), ref1, atol=ATOL, rtol=RTOL), \
        "mismatch (downsample)"

    # Case 2: downsample=False (identity path, inplanes == 4*planes).
    inplanes2, planes2 = 32, 8
    x2 = jax.random.normal(k_x2, (N, inplanes2, H, W), jnp.float32)
    p2 = make_params(k_p2, inplanes2, planes2, downsample=False)
    out2 = bottleneck_forward(x2, p2, downsample=False)
    jax.block_until_ready(out2)
    ref2 = reference_forward(x2, p2, downsample=False)
    assert out2.shape == (N, EXPANSION * planes2, H, W)
    assert jnp.allclose(out2.astype(jnp.float32), ref2, atol=ATOL, rtol=RTOL), \
        "mismatch (identity)"

    print("KERNEL_OK")
</pallas_src>

<mosaic_0001>
module attributes {stable_mosaic.version = 11 : i64} {
  func.func @kernel(%arg0: i32, %arg1: memref<1x16x16x16xbf16, #tpu.memory_space<vmem>>, %arg2: memref<16x8xbf16, #tpu.memory_space<vmem>>, %arg3: memref<1x8xf32, #tpu.memory_space<vmem>>, %arg4: memref<72x8xbf16, #tpu.memory_space<vmem>>, %arg5: memref<1x8xf32, #tpu.memory_space<vmem>>, %arg6: memref<8x32xbf16, #tpu.memory_space<vmem>>, %arg7: memref<1x32xf32, #tpu.memory_space<vmem>>, %arg8: memref<16x32xbf16, #tpu.memory_space<vmem>>, %arg9: memref<1x32xf32, #tpu.memory_space<vmem>>, %arg10: memref<1x16x16x32xbf16, #tpu.memory_space<vmem>>) attributes {dimension_semantics = [#tpu.dimension_semantics<parallel>], iteration_bounds = array<i64: 2>, scalar_prefetch = 0 : i64, scratch_operands = 0 : i64, tpu.core_type = #tpu.core_type<tc>, window_params = [{transform_indices = @transform_0, window_bounds = array<i64: 1, 16, 16, 16>}, {pipeline_mode = #tpu.pipeline_mode<synchronous>, transform_indices = @transform_1, window_bounds = array<i64: 16, 8>}, {pipeline_mode = #tpu.pipeline_mode<synchronous>, transform_indices = @transform_2, window_bounds = array<i64: 1, 8>}, {pipeline_mode = #tpu.pipeline_mode<synchronous>, transform_indices = @transform_3, window_bounds = array<i64: 72, 8>}, {pipeline_mode = #tpu.pipeline_mode<synchronous>, transform_indices = @transform_4, window_bounds = array<i64: 1, 8>}, {pipeline_mode = #tpu.pipeline_mode<synchronous>, transform_indices = @transform_5, window_bounds = array<i64: 8, 32>}, {pipeline_mode = #tpu.pipeline_mode<synchronous>, transform_indices = @transform_6, window_bounds = array<i64: 1, 32>}, {pipeline_mode = #tpu.pipeline_mode<synchronous>, transform_indices = @transform_7, window_bounds = array<i64: 16, 32>}, {pipeline_mode = #tpu.pipeline_mode<synchronous>, transform_indices = @transform_8, window_bounds = array<i64: 1, 32>}, {transform_indices = @transform_9, window_bounds = array<i64: 1, 16, 16, 32>}]} {
    %c0 = arith.constant 0 : index
    %c0_0 = arith.constant 0 : index
    %c0_1 = arith.constant 0 : index
    %c0_2 = arith.constant 0 : index
    %0 = vector.load %arg1[%c0, %c0_0, %c0_1, %c0_2] : memref<1x16x16x16xbf16, #tpu.memory_space<vmem>>, vector<1x16x16x16xbf16>
    %1 = vector.shape_cast %0 : vector<1x16x16x16xbf16> to vector<256x16xbf16>
    %c0_3 = arith.constant 0 : index
    %c0_4 = arith.constant 0 : index
    %2 = vector.load %arg8[%c0_3, %c0_4] : memref<16x32xbf16, #tpu.memory_space<vmem>>, vector<16x32xbf16>
    %cst = arith.constant dense<0.000000e+00> : vector<256x32xf32>
    %3 = tpu.matmul %1, %2, %cst {dimension_numbers = #tpu.dot_dimension_numbers<[1], [0], [0], [1], [0, 0, 1, 1], [], []>} : vector<256x16xbf16>, vector<16x32xbf16>, vector<256x32xf32> -> vector<256x32xf32>
    %c0_5 = arith.constant 0 : index
    %c0_6 = arith.constant 0 : index
    %4 = vector.load %arg9[%c0_5, %c0_6] : memref<1x32xf32, #tpu.memory_space<vmem>>, vector<1x32xf32>
    %5 = vector.broadcast %4 : vector<1x32xf32> to vector<256x32xf32>
    %6 = arith.addf %3, %5 : vector<256x32xf32>
    %c0_7 = arith.constant 0 : index
    %c0_8 = arith.constant 0 : index
    %7 = vector.load %arg2[%c0_7, %c0_8] : memref<16x8xbf16, #tpu.memory_space<vmem>>, vector<16x8xbf16>
    %cst_9 = arith.constant dense<0.000000e+00> : vector<256x8xf32>
    %8 = tpu.matmul %1, %7, %cst_9 {dimension_numbers = #tpu.dot_dimension_numbers<[1], [0], [0], [1], [0, 0, 1, 1], [], []>} : vector<256x16xbf16>, vector<16x8xbf16>, vector<256x8xf32> -> vector<256x8xf32>
    %c0_10 = arith.constant 0 : index
    %c0_11 = arith.constant 0 : index
    %9 = vector.load %arg3[%c0_10, %c0_11] : memref<1x8xf32, #tpu.memory_space<vmem>>, vector<1x8xf32>
    %10 = vector.broadcast %9 : vector<1x8xf32> to vector<256x8xf32>
    %11 = arith.addf %8, %10 : vector<256x8xf32>
    %cst_12 = arith.constant 0.000000e+00 : f32
    %12 = vector.broadcast %cst_12 : f32 to vector<256x8xf32>
    %13 = arith.maximumf %11, %12 : vector<256x8xf32>
    %14 = vector.shape_cast %13 : vector<256x8xf32> to vector<16x16x8xf32>
    %15 = tpu.iota {dimensions = array<i32: 1>} : vector<1x16x1xi32>
    %c0_i32 = arith.constant 0 : i32
    %16 = vector.broadcast %c0_i32 : i32 to vector<1x16x1xi32>
    %17 = arith.cmpi eq, %15, %16 : vector<1x16x1xi32>
    %c1_i32 = arith.constant 1 : i32
    %18 = tpu.dynamic_rotate %14 by %c1_i32 dim 1 : vector<16x16x8xf32>, i32 -> vector<16x16x8xf32>
    %cst_13 = arith.constant 0.000000e+00 : f32
    %19 = vector.shape_cast %17 : vector<1x16x1xi1> to vector<1x16x1xi1>
    %20 = vector.broadcast %19 : vector<1x16x1xi1> to vector<16x16x8xi1>
    %21 = vector.broadcast %cst_13 : f32 to vector<16x16x8xf32>
    %22 = arith.select %20, %21, %18 : vector<16x16x8xi1>, vector<16x16x8xf32>
    %c15_i32 = arith.constant 15 : i32
    %23 = vector.broadcast %c15_i32 : i32 to vector<1x16x1xi32>
    %24 = arith.cmpi eq, %15, %23 : vector<1x16x1xi32>
    %c15_i32_14 = arith.constant 15 : i32
    %25 = tpu.dynamic_rotate %14 by %c15_i32_14 dim 1 : vector<16x16x8xf32>, i32 -> vector<16x16x8xf32>
    %cst_15 = arith.constant 0.000000e+00 : f32
    %26 = vector.shape_cast %24 : vector<1x16x1xi1> to vector<1x16x1xi1>
    %27 = vector.broadcast %26 : vector<1x16x1xi1> to vector<16x16x8xi1>
    %28 = vector.broadcast %cst_15 : f32 to vector<16x16x8xf32>
    %29 = arith.select %27, %28, %25 : vector<16x16x8xi1>, vector<16x16x8xf32>
    %30 = tpu.concatenate %22, %14, %29 in 2 : vector<16x16x8xf32>, vector<16x16x8xf32>, vector<16x16x8xf32> -> vector<16x16x24xf32>
    %31 = arith.truncf %30 : vector<16x16x24xf32> to vector<16x16x24xbf16>
    %cst_16 = arith.constant 0.000000e+00 : bf16
    %32 = vector.broadcast %cst_16 : bf16 to vector<1x16x24xbf16>
    %33 = vector.extract_strided_slice %31 {offsets = [0, 0, 0], sizes = [15, 16, 24], strides = [1, 1, 1]} : vector<16x16x24xbf16> to vector<15x16x24xbf16>
    %34 = tpu.concatenate %32, %33 in 0 : vector<1x16x24xbf16>, vector<15x16x24xbf16> -> vector<16x16x24xbf16>
    %35 = vector.extract_strided_slice %31 {offsets = [1, 0, 0], sizes = [15, 16, 24], strides = [1, 1, 1]} : vector<16x16x24xbf16> to vector<15x16x24xbf16>
    %36 = tpu.concatenate %35, %32 in 0 : vector<15x16x24xbf16>, vector<1x16x24xbf16> -> vector<16x16x24xbf16>
    %37 = tpu.concatenate %34, %31, %36 in 2 : vector<16x16x24xbf16>, vector<16x16x24xbf16>, vector<16x16x24xbf16> -> vector<16x16x72xbf16>
    %38 = vector.shape_cast %37 : vector<16x16x72xbf16> to vector<256x72xbf16>
    %c0_17 = arith.constant 0 : index
    %c0_18 = arith.constant 0 : index
    %39 = vector.load %arg4[%c0_17, %c0_18] : memref<72x8xbf16, #tpu.memory_space<vmem>>, vector<72x8xbf16>
    %cst_19 = arith.constant dense<0.000000e+00> : vector<256x8xf32>
    %40 = tpu.matmul %38, %39, %cst_19 {dimension_numbers = #tpu.dot_dimension_numbers<[1], [0], [0], [1], [0, 0, 1, 1], [], []>} : vector<256x72xbf16>, vector<72x8xbf16>, vector<256x8xf32> -> vector<256x8xf32>
    %c0_20 = arith.constant 0 : index
    %c0_21 = arith.constant 0 : index
    %41 = vector.load %arg5[%c0_20, %c0_21] : memref<1x8xf32, #tpu.memory_space<vmem>>, vector<1x8xf32>
    %42 = vector.broadcast %41 : vector<1x8xf32> to vector<256x8xf32>
    %43 = arith.addf %40, %42 : vector<256x8xf32>
    %cst_22 = arith.constant 0.000000e+00 : f32
    %44 = vector.broadcast %cst_22 : f32 to vector<256x8xf32>
    %45 = arith.maximumf %43, %44 : vector<256x8xf32>
    %46 = arith.truncf %45 : vector<256x8xf32> to vector<256x8xbf16>
    %c0_23 = arith.constant 0 : index
    %c0_24 = arith.constant 0 : index
    %47 = vector.load %arg6[%c0_23, %c0_24] : memref<8x32xbf16, #tpu.memory_space<vmem>>, vector<8x32xbf16>
    %cst_25 = arith.constant dense<0.000000e+00> : vector<256x32xf32>
    %48 = tpu.matmul %46, %47, %cst_25 {dimension_numbers = #tpu.dot_dimension_numbers<[1], [0], [0], [1], [0, 0, 1, 1], [], []>} : vector<256x8xbf16>, vector<8x32xbf16>, vector<256x32xf32> -> vector<256x32xf32>
    %c0_26 = arith.constant 0 : index
    %c0_27 = arith.constant 0 : index
    %49 = vector.load %arg7[%c0_26, %c0_27] : memref<1x32xf32, #tpu.memory_space<vmem>>, vector<1x32xf32>
    %50 = vector.broadcast %49 : vector<1x32xf32> to vector<256x32xf32>
    %51 = arith.addf %48, %50 : vector<256x32xf32>
    %52 = arith.addf %51, %6 : vector<256x32xf32>
    %cst_28 = arith.constant 0.000000e+00 : f32
    %53 = vector.broadcast %cst_28 : f32 to vector<256x32xf32>
    %54 = arith.maximumf %52, %53 : vector<256x32xf32>
    %55 = arith.truncf %54 : vector<256x32xf32> to vector<256x32xbf16>
    %56 = vector.shape_cast %55 : vector<256x32xbf16> to vector<1x16x16x32xbf16>
    %c0_29 = arith.constant 0 : index
    %c0_30 = arith.constant 0 : index
    %c0_31 = arith.constant 0 : index
    %c0_32 = arith.constant 0 : index
    %57 = vector.load %arg10[%c0_29, %c0_30, %c0_31, %c0_32] : memref<1x16x16x32xbf16, #tpu.memory_space<vmem>>, vector<1x16x16x32xbf16>
    tpu.vector_store %arg10[%c0_29, %c0_30, %c0_31, %c0_32], %56 {strides = array<i32>} : memref<1x16x16x32xbf16, #tpu.memory_space<vmem>>, vector<1x16x16x32xbf16>,
    return
  }
  func.func @transform_0(%arg0: i32) -> (i32, i32, i32, i32) {
    %c0_i32 = arith.constant 0 : i32
    %c0_i32_0 = arith.constant 0 : i32
    %c0_i32_1 = arith.constant 0 : i32
    %c0_i32_2 = arith.constant 0 : i32
    return %arg0, %c0_i32, %c0_i32_0, %c0_i32_1 : i32, i32, i32, i32
  }
  func.func @transform_1(%arg0: i32) -> (i32, i32) {
    %c0_i32 = arith.constant 0 : i32
    %c0_i32_0 = arith.constant 0 : i32
    %c0_i32_1 = arith.constant 0 : i32
    return %c0_i32, %c0_i32_0 : i32, i32
  }
  func.func @transform_2(%arg0: i32) -> (i32, i32) {
    %c0_i32 = arith.constant 0 : i32
    %c0_i32_0 = arith.constant 0 : i32
    %c0_i32_1 = arith.constant 0 : i32
    return %c0_i32, %c0_i32_0 : i32, i32
  }
  func.func @transform_3(%arg0: i32) -> (i32, i32) {
    %c0_i32 = arith.constant 0 : i32
    %c0_i32_0 = arith.constant 0 : i32
    %c0_i32_1 = arith.constant 0 : i32
    return %c0_i32, %c0_i32_0 : i32, i32
  }
  func.func @transform_4(%arg0: i32) -> (i32, i32) {
    %c0_i32 = arith.constant 0 : i32
    %c0_i32_0 = arith.constant 0 : i32
    %c0_i32_1 = arith.constant 0 : i32
    return %c0_i32, %c0_i32_0 : i32, i32
  }
  func.func @transform_5(%arg0: i32) -> (i32, i32) {
    %c0_i32 = arith.constant 0 : i32
    %c0_i32_0 = arith.constant 0 : i32
    %c0_i32_1 = arith.constant 0 : i32
    return %c0_i32, %c0_i32_0 : i32, i32
  }
  func.func @transform_6(%arg0: i32) -> (i32, i32) {
    %c0_i32 = arith.constant 0 : i32
    %c0_i32_0 = arith.constant 0 : i32
    %c0_i32_1 = arith.constant 0 : i32
    return %c0_i32, %c0_i32_0 : i32, i32
  }
  func.func @transform_7(%arg0: i32) -> (i32, i32) {
    %c0_i32 = arith.constant 0 : i32
    %c0_i32_0 = arith.constant 0 : i32
    %c0_i32_1 = arith.constant 0 : i32
    return %c0_i32, %c0_i32_0 : i32, i32
  }
  func.func @transform_8(%arg0: i32) -> (i32, i32) {
    %c0_i32 = arith.constant 0 : i32
    %c0_i32_0 = arith.constant 0 : i32
    %c0_i32_1 = arith.constant 0 : i32
    return %c0_i32, %c0_i32_0 : i32, i32
  }
  func.func @transform_9(%arg0: i32) -> (i32, i32, i32, i32) {
    %c0_i32 = arith.constant 0 : i32
    %c0_i32_0 = arith.constant 0 : i32
    %c0_i32_1 = arith.constant 0 : i32
    %c0_i32_2 = arith.constant 0 : i32
    return %arg0, %c0_i32, %c0_i32_0, %c0_i32_1 : i32, i32, i32, i32
  }
}

</mosaic_0001>

<llo_original>
// kernel: tpu_custom_call.1
$region0: #{tpu_custom_call.1}
  #allocation0 [shape = 'u32[]', space=smem, size = 0x4, offset = 0x4, fixed_abs, tag = 'smem constant byte address 0x4 - core index']
  #allocation1 [shape = 'u32[144,128]{1,0:T(1,128)}', space=vmem, size = 0x12000, scoped, tag = 'internal scratch']
  %s0 = inlined_call_operand.hbm [shape: bf16[2,16,16,16], index: 0, kind: input, shape index: {}]
  %s1 = inlined_call_operand.vmem [shape: bf16[16,8], index: 1, kind: input, shape index: {}]
  %s2 = inlined_call_operand.vmem [shape: f32[1,8], index: 2, kind: input, shape index: {}]
  %s3 = inlined_call_operand.vmem [shape: bf16[72,8], index: 3, kind: input, shape index: {}]
  %s4 = inlined_call_operand.vmem [shape: f32[1,8], index: 4, kind: input, shape index: {}]
  %s5 = inlined_call_operand.vmem [shape: bf16[8,32], index: 5, kind: input, shape index: {}]
  %s6 = inlined_call_operand.vmem [shape: f32[1,32], index: 6, kind: input, shape index: {}]
  %s7 = inlined_call_operand.vmem [shape: bf16[16,32], index: 7, kind: input, shape index: {}]
  %s8 = inlined_call_operand.vmem [shape: f32[1,32], index: 8, kind: input, shape index: {}]
  %s9 = inlined_call_operand.hbm [shape: bf16[2,16,16,32], index: 9, kind: output, shape index: {}]
  %s10 = sld [smem:[#allocation0]]
  $region73: #{tpu_custom_call.1} parent=0
    _
  %s12 = ssub.s32 1, %s10
  %s13 = scalar_select 0, %s12, %s10
  $region1: #{tpu_custom_call.1} parent=0
    #allocation2 [shape = 'u8[131072]{0}', space=vmem, size = 0x20000, scoped, tag = 'input window, operand 0']
    #allocation3 [shape = 's32[2]{0}', space=sflag, size = 0x8, scoped, tag = 'scoped memory for tpu_custom_call.1']
    #allocation4 [shape = 's32[2]{0}', space=sflag, size = 0x8, scoped, tag = 'scoped memory for tpu_custom_call.1']
    #allocation5 [shape = 'u8[131072]{0}', space=vmem, size = 0x20000, scoped, tag = 'output window, operand 0']
    %14 = vsyncpa [#allocation3], 0
    %s15 = scalar_lea.sflag [#allocation3], 1
    %16 = vsyncpa %s15, 0
    %17 = vsyncpa [#allocation4], 0
    %s18 = scalar_lea.sflag [#allocation4], 1
    %19 = vsyncpa %s18, 0
    loop: start=0, step=1, limit=4
    $region2: #{tpu_custom_call.1} parent=1 // loop_pre_header
      _
    $region3: #{tpu_custom_call.1} parent=1 // loop_header
      %s21 = sphi 0, %s25
      %p22 = scmp.ge.s32.totalorder %s21, 4
      %s31 = sphi 0, %s33
      %s34 = sphi 0, %s31
      %s35 = sphi 0, %s34
      %s51 = sphi 0, %s35
      %s55 = sphi 0, %s55
      %s57 = sphi 0, %s55
      %s58 = sphi 0, %s57
      %s72 = sphi 0, %s58
      %s76 = sphi 0, %s76
      %s78 = sphi 0, %s76
      %s79 = sphi 0, %s78
      %s93 = sphi 0, %s79
      %s97 = sphi 0, %s97
      %s99 = sphi 0, %s97
      %s100 = sphi 0, %s99
      %s114 = sphi 0, %s100
      %s118 = sphi 0, %s118
      %s120 = sphi 0, %s118
      %s121 = sphi 0, %s120
      %s135 = sphi 0, %s121
      %s139 = sphi 0, %s139
      %s141 = sphi 0, %s139
      %s142 = sphi 0, %s141
      %s156 = sphi 0, %s142
      %s160 = sphi 0, %s160
      %s162 = sphi 0, %s160
      %s163 = sphi 0, %s162
      %s177 = sphi 0, %s163
      %s181 = sphi 0, %s181
      %s183 = sphi 0, %s181
      %s184 = sphi 0, %s183
      %s198 = sphi 0, %s184
      %s202 = sphi 0, %s202
      %s204 = sphi 0, %s202
      %s205 = sphi 0, %s204
      %s219 = sphi 0, %s205
      %s225 = sphi 0, %s227
      %s228 = sphi 0, %s225
      %s229 = sphi 0, %s228
      %s245 = sphi 0, %s229
    $region4: #{tpu_custom_call.1} parent=1 // loop_header_branch
      %24 = sbr.rel (%p22) target = $region8
    $region5: #{tpu_custom_call.1} parent=1 // loop_body
      %s26 = ssub.s32 %s21, 1
      %s27 = ssub.s32 %s21, 2
      %s28 = sadd.s32 %s21, 1
      %s29 = ssub.s32 %s21, %s28
      %p30 = scmp.eq.s32.totalorder %s29, 0
      %s32 = sadd.s32 %s31, 1
      %s33 = scalar_select %p30, %s31, %s32
      %p36 = pneg %p30
      %p37 = scmp.eq.s32.totalorder %s21, 1
      %p38 = por %p36, %p37
      %p39 = scmp.ne.s32.totalorder %s31, %s34
      %p40 = scmp.eq.s32.totalorder %s21, 0
      %p41 = por %p39, %p40
      %p42 = scmp.ne.s32.totalorder %s31, %s34
      %p43 = scmp.eq.s32.totalorder %s26, 1
      %p44 = por %p42, %p43
      %p45 = scmp.ne.s32.totalorder %s34, %s35
      %p46 = scmp.eq.s32.totalorder %s26, 0
      %p47 = por %p45, %p46
      %p48 = scmp.ne.s32.totalorder %s34, %s35
      %p49 = scmp.eq.s32.totalorder %s27, 1
      %p50 = por %p48, %p49
      %p52 = scmp.ne.s32.totalorder %s35, %s51
      %p53 = scmp.eq.s32.totalorder %s27, 0
      %p54 = por %p52, %p53
      %s56 = sadd.s32 %s55, 1
      %p59 = scmp.eq.s32.totalorder %s21, 1
      %p60 = scmp.ne.s32.totalorder %s55, %s57
      %p61 = scmp.eq.s32.totalorder %s21, 0
      %p62 = por %p60, %p61
      %p63 = scmp.ne.s32.totalorder %s55, %s57
      %p64 = scmp.eq.s32.totalorder %s26, 1
      %p65 = por %p63, %p64
      %p66 = scmp.ne.s32.totalorder %s57, %s58
      %p67 = scmp.eq.s32.totalorder %s26, 0
      %p68 = por %p66, %p67
      %p69 = scmp.ne.s32.totalorder %s57, %s58
      %p70 = scmp.eq.s32.totalorder %s27, 1
      %p71 = por %p69, %p70
      %p73 = scmp.ne.s32.totalorder %s58, %s72
      %p74 = scmp.eq.s32.totalorder %s27, 0
      %p75 = por %p73, %p74
      %s77 = sadd.s32 %s76, 1
      %p80 = scmp.eq.s32.totalorder %s21, 1
      %p81 = scmp.ne.s32.totalorder %s76, %s78
      %p82 = scmp.eq.s32.totalorder %s21, 0
      %p83 = por %p81, %p82
      %p84 = scmp.ne.s32.totalorder %s76, %s78
      %p85 = scmp.eq.s32.totalorder %s26, 1
      %p86 = por %p84, %p85
      %p87 = scmp.ne.s32.totalorder %s78, %s79
      %p88 = scmp.eq.s32.totalorder %s26, 0
      %p89 = por %p87, %p88
      %p90 = scmp.ne.s32.totalorder %s78, %s79
      %p91 = scmp.eq.s32.totalorder %s27, 1
      %p92 = por %p90, %p91
      %p94 = scmp.ne.s32.totalorder %s79, %s93
      %p95 = scmp.eq.s32.totalorder %s27, 0
      %p96 = por %p94, %p95
      %s98 = sadd.s32 %s97, 1
      %p101 = scmp.eq.s32.totalorder %s21, 1
      %p102 = scmp.ne.s32.totalorder %s97, %s99
      %p103 = scmp.eq.s32.totalorder %s21, 0
      %p104 = por %p102, %p103
      %p105 = scmp.ne.s32.totalorder %s97, %s99
      %p106 = scmp.eq.s32.totalorder %s26, 1
      %p107 = por %p105, %p106
      %p108 = scmp.ne.s32.totalorder %s99, %s100
      %p109 = scmp.eq.s32.totalorder %s26, 0
      %p110 = por %p108, %p109
      %p111 = scmp.ne.s32.totalorder %s99, %s100
      %p112 = scmp.eq.s32.totalorder %s27, 1
      %p113 = por %p111, %p112
      %p115 = scmp.ne.s32.totalorder %s100, %s114
      %p116 = scmp.eq.s32.totalorder %s27, 0
      %p117 = por %p115, %p116
      %s119 = sadd.s32 %s118, 1
      %p122 = scmp.eq.s32.totalorder %s21, 1
      %p123 = scmp.ne.s32.totalorder %s118, %s120
      %p124 = scmp.eq.s32.totalorder %s21, 0
      %p125 = por %p123, %p124
      %p126 = scmp.ne.s32.totalorder %s118, %s120
      %p127 = scmp.eq.s32.totalorder %s26, 1
      %p128 = por %p126, %p127
      %p129 = scmp.ne.s32.totalorder %s120, %s121
      %p130 = scmp.eq.s32.totalorder %s26, 0
      %p131 = por %p129, %p130
      %p132 = scmp.ne.s32.totalorder %s120, %s121
      %p133 = scmp.eq.s32.totalorder %s27, 1
      %p134 = por %p132, %p133
      %p136 = scmp.ne.s32.totalorder %s121, %s135
      %p137 = scmp.eq.s32.totalorder %s27, 0
      %p138 = por %p136, %p137
      %s140 = sadd.s32 %s139, 1
      %p143 = scmp.eq.s32.totalorder %s21, 1
      %p144 = scmp.ne.s32.totalorder %s139, %s141
      %p145 = scmp.eq.s32.totalorder %s21, 0
      %p146 = por %p144, %p145
      %p147 = scmp.ne.s32.totalorder %s139, %s141
      %p148 = scmp.eq.s32.totalorder %s26, 1
      %p149 = por %p147, %p148
      %p150 = scmp.ne.s32.totalorder %s141, %s142
      %p151 = scmp.eq.s32.totalorder %s26, 0
      %p152 = por %p150, %p151
      %p153 = scmp.ne.s32.totalorder %s141, %s142
      %p154 = scmp.eq.s32.totalorder %s27, 1
      %p155 = por %p153, %p154
      %p157 = scmp.ne.s32.totalorder %s142, %s156
      %p158 = scmp.eq.s32.totalorder %s27, 0
      %p159 = por %p157, %p158
      %s161 = sadd.s32 %s160, 1
      %p164 = scmp.eq.s32.totalorder %s21, 1
      %p165 = scmp.ne.s32.totalorder %s160, %s162
      %p166 = scmp.eq.s32.totalorder %s21, 0
      %p167 = por %p165, %p166
      %p168 = scmp.ne.s32.totalorder %s160, %s162
      %p169 = scmp.eq.s32.totalorder %s26, 1
      %p170 = por %p168, %p169
      %p171 = scmp.ne.s32.totalorder %s162, %s163
      %p172 = scmp.eq.s32.totalorder %s26, 0
      %p173 = por %p171, %p172
      %p174 = scmp.ne.s32.totalorder %s162, %s163
      %p175 = scmp.eq.s32.totalorder %s27, 1
      %p176 = por %p174, %p175
      %p178 = scmp.ne.s32.totalorder %s163, %s177
      %p179 = scmp.eq.s32.totalorder %s27, 0
      %p180 = por %p178, %p179
      %s182 = sadd.s32 %s181, 1
      %p185 = scmp.eq.s32.totalorder %s21, 1
      %p186 = scmp.ne.s32.totalorder %s181, %s183
      %p187 = scmp.eq.s32.totalorder %s21, 0
      %p188 = por %p186, %p187
      %p189 = scmp.ne.s32.totalorder %s181, %s183
      %p190 = scmp.eq.s32.totalorder %s26, 1
      %p191 = por %p189, %p190
      %p192 = scmp.ne.s32.totalorder %s183, %s184
      %p193 = scmp.eq.s32.totalorder %s26, 0
      %p194 = por %p192, %p193
      %p195 = scmp.ne.s32.totalorder %s183, %s184
      %p196 = scmp.eq.s32.totalorder %s27, 1
      %p197 = por %p195, %p196
      %p199 = scmp.ne.s32.totalorder %s184, %s198
      %p200 = scmp.eq.s32.totalorder %s27, 0
      %p201 = por %p199, %p200
      %s203 = sadd.s32 %s202, 1
      %p206 = scmp.eq.s32.totalorder %s21, 1
      %p207 = scmp.ne.s32.totalorder %s202, %s204
      %p208 = scmp.eq.s32.totalorder %s21, 0
      %p209 = por %p207, %p208
      %p210 = scmp.ne.s32.totalorder %s202, %s204
      %p211 = scmp.eq.s32.totalorder %s26, 1
      %p212 = por %p210, %p211
      %p213 = scmp.ne.s32.totalorder %s204, %s205
      %p214 = scmp.eq.s32.totalorder %s26, 0
      %p215 = por %p213, %p214
      %p216 = scmp.ne.s32.totalorder %s204, %s205
      %p217 = scmp.eq.s32.totalorder %s27, 1
      %p218 = por %p216, %p217
      %p220 = scmp.ne.s32.totalorder %s205, %s219
      %p221 = scmp.eq.s32.totalorder %s27, 0
      %p222 = por %p220, %p221
      %s223 = ssub.s32 %s21, %s28
      %p224 = scmp.eq.s32.totalorder %s223, 0
      %s226 = sadd.s32 %s225, 1
      %s227 = scalar_select %p224, %s225, %s226
      %p230 = pneg %p224
      %p231 = scmp.eq.s32.totalorder %s21, 1
      %p232 = por %p230, %p231
      %p233 = scmp.ne.s32.totalorder %s225, %s228
      %p234 = scmp.eq.s32.totalorder %s21, 0
      %p235 = por %p233, %p234
      %p236 = scmp.ne.s32.totalorder %s225, %s228
      %p237 = scmp.eq.s32.totalorder %s26, 1
      %p238 = por %p236, %p237
      %p239 = scmp.ne.s32.totalorder %s228, %s229
      %p240 = scmp.eq.s32.totalorder %s26, 0
      %p241 = por %p239, %p240
      %p242 = scmp.ne.s32.totalorder %s228, %s229
      %p243 = scmp.eq.s32.totalorder %s27, 1
      %p244 = por %p242, %p243
      %p246 = scmp.ne.s32.totalorder %s229, %s245
      %p247 = scmp.eq.s32.totalorder %s27, 0
      %p248 = por %p246, %p247
      %p249 = scmp.le.s32.totalorder 1, %s21
      %p250 = scmp.lt.s32.totalorder %s21, 3
      %p251 = pnand %p249, %p250
      %p252 = pneg %p251
      // Predicated region
      $region9: #{tpu_custom_call.1} parent=5 // pred_check
        _
      $region10: #{tpu_custom_call.1} parent=5 // pred_check_branch
        %254 = sbr.rel (%p251) target = $region12
      $region11: #{tpu_custom_call.1} parent=5 // pred_region
        %s255 = ssub.s32 %s21, 1
        // Predicated region
        $region13: #{tpu_custom_call.1} parent=11 // pred_check
          %p256 = pneg %p68
        $region14: #{tpu_custom_call.1} parent=11 // pred_check_branch
          %258 = sbr.rel (%p256) target = $region16
        $region15: #{tpu_custom_call.1} parent=11 // pred_region
          _
        $region16: #{tpu_custom_call.1} parent=11 // pred_fallthru
          _
        // Predicated region
        $region17: #{tpu_custom_call.1} parent=11 // pred_check
          %p259 = pneg %p89
        $region18: #{tpu_custom_call.1} parent=11 // pred_check_branch
          %261 = sbr.rel (%p259) target = $region20
        $region19: #{tpu_custom_call.1} parent=11 // pred_region
          _
        $region20: #{tpu_custom_call.1} parent=11 // pred_fallthru
          _
        // Predicated region
        $region21: #{tpu_custom_call.1} parent=11 // pred_check
          %p262 = pneg %p110
        $region22: #{tpu_custom_call.1} parent=11 // pred_check_branch
          %264 = sbr.rel (%p262) target = $region24
        $region23: #{tpu_custom_call.1} parent=11 // pred_region
          _
        $region24: #{tpu_custom_call.1} parent=11 // pred_fallthru
          _
        // Predicated region
        $region25: #{tpu_custom_call.1} parent=11 // pred_check
          %p265 = pneg %p131
        $region26: #{tpu_custom_call.1} parent=11 // pred_check_branch
          %267 = sbr.rel (%p265) target = $region28
        $region27: #{tpu_custom_call.1} parent=11 // pred_region
          _
        $region28: #{tpu_custom_call.1} parent=11 // pred_fallthru
          _
        // Predicated region
        $region29: #{tpu_custom_call.1} parent=11 // pred_check
          %p268 = pneg %p152
        $region30: #{tpu_custom_call.1} parent=11 // pred_check_branch
          %270 = sbr.rel (%p268) target = $region32
        $region31: #{tpu_custom_call.1} parent=11 // pred_region
          _
        $region32: #{tpu_custom_call.1} parent=11 // pred_fallthru
          _
        // Predicated region
        $region33: #{tpu_custom_call.1} parent=11 // pred_check
          %p271 = pneg %p173
        $region34: #{tpu_custom_call.1} parent=11 // pred_check_branch
          %273 = sbr.rel (%p271) target = $region36
        $region35: #{tpu_custom_call.1} parent=11 // pred_region
          _
        $region36: #{tpu_custom_call.1} parent=11 // pred_fallthru
          _
        // Predicated region
        $region37: #{tpu_custom_call.1} parent=11 // pred_check
          %p274 = pneg %p194
        $region38: #{tpu_custom_call.1} parent=11 // pred_check_branch
          %276 = sbr.rel (%p274) target = $region40
        $region39: #{tpu_custom_call.1} parent=11 // pred_region
          _
        $region40: #{tpu_custom_call.1} parent=11 // pred_fallthru
          _
        // Predicated region
        $region41: #{tpu_custom_call.1} parent=11 // pred_check
          %p277 = pneg %p215
        $region42: #{tpu_custom_call.1} parent=11 // pred_check_branch
          %279 = sbr.rel (%p277) target = $region44
        $region43: #{tpu_custom_call.1} parent=11 // pred_region
          _
        $region44: #{tpu_custom_call.1} parent=11 // pred_fallthru
          _
      $region12: #{tpu_custom_call.1} parent=5 // pred_fallthru
        _
      %p280 = scmp.lt.s32.totalorder %s21, 2
      // Predicated region
      $region45: #{tpu_custom_call.1} parent=5 // pred_check
        %p281 = pneg %p280
      $region46: #{tpu_custom_call.1} parent=5 // pred_check_branch
        %283 = sbr.rel (%p281) target = $region48
      $region47: #{tpu_custom_call.1} parent=5 // pred_region
        // Predicated region
        $region49: #{tpu_custom_call.1} parent=47 // pred_check
          %p284 = pneg %p41
        $region50: #{tpu_custom_call.1} parent=47 // pred_check_branch
          %286 = sbr.rel (%p284) target = $region52
        $region51: #{tpu_custom_call.1} parent=47 // pred_region
          %s287 = sand.u32 %s31, 1
          %s288 = scalar_lea.sflag [#allocation3], %s287
          %s289 = sand.u32 %s31, 1
          %s290 = smul.addr %s289, 128
          %s291 = scalar_lea.vmem [#allocation2], %s290
          %s293 = ssub.s32 2048, 2048
          %294 = vsyncadd %s288, %s293
          %s295 = smul.addr %s21, 32
          %s296 = smul.addr %s295, 64
          %s297 = scalar_lea.hbm %s0, %s296
          %s298 = sshll.u32 %s291, 4
          %s299 = int_to_ptr.vmem [resolvable:$true] %s298
          %304 = dma.hbm_to_vmem [thread:$0]  %s297, 2048, %s299, %s288, 64, 64, 4
        $region52: #{tpu_custom_call.1} parent=47 // pred_fallthru
          _
      $region48: #{tpu_custom_call.1} parent=5 // pred_fallthru
        _
      %p305 = scmp.le.s32.totalorder 1, %s21
      %p306 = scmp.lt.s32.totalorder %s21, 3
      %p307 = pnand %p305, %p306
      %p308 = pneg %p307
      // Predicated region
      $region53: #{tpu_custom_call.1} parent=5 // pred_check
        _
      $region54: #{tpu_custom_call.1} parent=5 // pred_check_branch
        %310 = sbr.rel (%p307) target = $region56
      $region55: #{tpu_custom_call.1} parent=5 // pred_region
        %s311 = ssub.s32 %s21, 1
        %s312 = sand.u32 %s34, 1
        %s313 = scalar_lea.sflag [#allocation3], %s312
        %s314 = sand.u32 %s34, 1
        %s315 = smul.addr %s314, 128
        %s316 = scalar_lea.vmem [#allocation2], %s315
        // Predicated region
        $region57: #{tpu_custom_call.1} parent=55 // pred_check
          %p317 = pneg %p47
        $region58: #{tpu_custom_call.1} parent=55 // pred_check_branch
          %319 = sbr.rel (%p317) target = $region60
        $region59: #{tpu_custom_call.1} parent=55 // pred_region
          %320 = dma.done %s313, 2048
        $region60: #{tpu_custom_call.1} parent=55 // pred_fallthru
          _
        %s321 = sand.u32 %s34, 1
        %s322 = scalar_lea.sflag [#allocation3], %s321
        %s323 = sand.u32 %s34, 1
        %s324 = smul.addr %s323, 128
        %s325 = scalar_lea.vmem [#allocation2], %s324
        %p326 = pneg %p47
        %p327 = pneg %p44
        %p328 = pneg %p68
        %p329 = pneg %p65
        %p330 = pneg %p89
        %p331 = pneg %p86
        %p332 = pneg %p110
        %p333 = pneg %p107
        %p334 = pneg %p131
        %p335 = pneg %p128
        %p336 = pneg %p152
        %p337 = pneg %p149
        %p338 = pneg %p173
        %p339 = pneg %p170
        %p340 = pneg %p194
        %p341 = pneg %p191
        %p342 = pneg %p215
        %p343 = pneg %p212
        %p344 = pneg %p241
        %p345 = pneg %p238
        %s346 = sand.u32 %s228, 1
        %s347 = scalar_lea.sflag [#allocation4], %s346
        %s348 = sand.u32 %s228, 1
        %s349 = smul.addr %s348, 128
        %s350 = scalar_lea.vmem [#allocation5], %s349
        %v352 = vld [vmem:[%s316] sm:$0xf]
        %v353 = vld [vmem:[%s316 + $0x4] sm:$0xf]
        %v354 = vld [vmem:[%s316 + $0x8] sm:$0xf]
        %v355 = vld [vmem:[%s316 + $0xc] sm:$0xf]
        %v356 = vld [vmem:[%s316 + $0x10] sm:$0xf]
        %v357 = vld [vmem:[%s316 + $0x14] sm:$0xf]
        %v358 = vld [vmem:[%s316 + $0x18] sm:$0xf]
        %v359 = vld [vmem:[%s316 + $0x1c] sm:$0xf]
        %v360 = vld [vmem:[%s316 + $0x20] sm:$0xf]
        %v361 = vld [vmem:[%s316 + $0x24] sm:$0xf]
        %v362 = vld [vmem:[%s316 + $0x28] sm:$0xf]
        %v363 = vld [vmem:[%s316 + $0x2c] sm:$0xf]
        %v364 = vld [vmem:[%s316 + $0x30] sm:$0xf]
        %v365 = vld [vmem:[%s316 + $0x34] sm:$0xf]
        %v366 = vld [vmem:[%s316 + $0x38] sm:$0xf]
        %v367 = vld [vmem:[%s316 + $0x3c] sm:$0xf]
        %v368 = vld [vmem:[%s316 + $0x40] sm:$0xf]
        %v369 = vld [vmem:[%s316 + $0x44] sm:$0xf]
        %v370 = vld [vmem:[%s316 + $0x48] sm:$0xf]
        %v371 = vld [vmem:[%s316 + $0x4c] sm:$0xf]
        %v372 = vld [vmem:[%s316 + $0x50] sm:$0xf]
        %v373 = vld [vmem:[%s316 + $0x54] sm:$0xf]
        %v374 = vld [vmem:[%s316 + $0x58] sm:$0xf]
        %v375 = vld [vmem:[%s316 + $0x5c] sm:$0xf]
        %v376 = vld [vmem:[%s316 + $0x60] sm:$0xf]
        %v377 = vld [vmem:[%s316 + $0x64] sm:$0xf]
        %v378 = vld [vmem:[%s316 + $0x68] sm:$0xf]
        %v379 = vld [vmem:[%s316 + $0x6c] sm:$0xf]
        %v380 = vld [vmem:[%s316 + $0x70] sm:$0xf]
        %v381 = vld [vmem:[%s316 + $0x74] sm:$0xf]
        %v382 = vld [vmem:[%s316 + $0x78] sm:$0xf]
        %v383 = vld [vmem:[%s316 + $0x7c] sm:$0xf]
        %v384 = vld [vmem:[%s7] sm:$0xf]
        %v385 = vld [vmem:[%s7 + $0x4] sm:$0xf]
        %v386 = vld [vmem:[%s8] sm:$0x1]
        %v388 = vlaneseq
        %v389 = vshrl.u32 %v388, 7
        %v390 = vsub.s32 0, %v389
        %v391 = vrot.slane %v386, %v390
        %v425 = vunpack.c.l.b16 %v352
        %v426 = vunpack.c.l.b16 %v353
        %v427 = vunpack.c.l.b16 %v354
        %v428 = vunpack.c.l.b16 %v355
        %v429 = vunpack.c.l.b16 %v356
        %v430 = vunpack.c.l.b16 %v357
        %v431 = vunpack.c.l.b16 %v358
        %v432 = vunpack.c.l.b16 %v359
        %v433 = vunpack.c.l.b16 %v360
        %v434 = vunpack.c.l.b16 %v361
        %v435 = vunpack.c.l.b16 %v362
        %v436 = vunpack.c.l.b16 %v363
        %v437 = vunpack.c.l.b16 %v364
        %v438 = vunpack.c.l.b16 %v365
        %v439 = vunpack.c.l.b16 %v366
        %v440 = vunpack.c.l.b16 %v367
        %v441 = vunpack.c.l.b16 %v368
        %v442 = vunpack.c.l.b16 %v369
        %v443 = vunpack.c.l.b16 %v370
        %v444 = vunpack.c.l.b16 %v371
        %v445 = vunpack.c.l.b16 %v372
        %v446 = vunpack.c.l.b16 %v373
        %v447 = vunpack.c.l.b16 %v374
        %v448 = vunpack.c.l.b16 %v375
        %v449 = vunpack.c.l.b16 %v376
        %v450 = vunpack.c.l.b16 %v377
        %v451 = vunpack.c.l.b16 %v378
        %v452 = vunpack.c.l.b16 %v379
        %v453 = vunpack.c.l.b16 %v380
        %v454 = vunpack.c.l.b16 %v381
        %v455 = vunpack.c.l.b16 %v382
        %v456 = vunpack.c.l.b16 %v383
        %v457 = vpack.c.b16 %v426, %v425
        %v458 = vpack.c.b16 %v428, %v427
        %v459 = vpack.c.b16 %v430, %v429
        %v460 = vpack.c.b16 %v432, %v431
        %v461 = vpack.c.b16 %v434, %v433
        %v462 = vpack.c.b16 %v436, %v435
        %v463 = vpack.c.b16 %v438, %v437
        %v464 = vpack.c.b16 %v440, %v439
        %v465 = vpack.c.b16 %v442, %v441
        %v466 = vpack.c.b16 %v444, %v443
        %v467 = vpack.c.b16 %v446, %v445
        %v468 = vpack.c.b16 %v448, %v447
        %v469 = vpack.c.b16 %v450, %v449
        %v470 = vpack.c.b16 %v452, %v451
        %v471 = vpack.c.b16 %v454, %v453
        %v472 = vpack.c.b16 %v456, %v455
        %v475 = vunpack.c.l.b16 %v384
        %v476 = vunpack.c.l.b16 %v385
        %v477 = vpack.c.b16 %v476, %v475
        %vm479 = vcmask 130048
        %v481 = vsel %vm479, %v457, 0
        %v484 = vsel %vm479, %v458, 0
        %v487 = vsel %vm479, %v459, 0
        %v490 = vsel %vm479, %v460, 0
        %v493 = vsel %vm479, %v461, 0
        %v496 = vsel %vm479, %v462, 0
        %v499 = vsel %vm479, %v463, 0
        %v502 = vsel %vm479, %v464, 0
        %v505 = vsel %vm479, %v465, 0
        %v508 = vsel %vm479, %v466, 0
        %v511 = vsel %vm479, %v467, 0
        %v514 = vsel %vm479, %v468, 0
        %v517 = vsel %vm479, %v469, 0
        %v520 = vsel %vm479, %v470, 0
        %v523 = vsel %vm479, %v471, 0
        %v526 = vsel %vm479, %v472, 0
        %528 = vmatprep.subr.bf16.mxu0 0
        %529 = vmatpush1.bf16.msra.mxu0 %v477
        %530 = vmatprep.subr.bf16.mxu0 0
        %531 = vmatpush1.bf16.msra.mxu0 0
        %532 = vmatprep.subr.bf16.mxu0 0
        %533 = vmatpush1.bf16.msra.mxu0 0
        %534 = vmatprep.subr.bf16.mxu0 0
        %535 = vmatpush1.bf16.msra.mxu0 0
        %536 = vmatprep.subr.bf16.mxu0 0
        %537 = vmatpush1.bf16.msra.mxu0 0
        %538 = vmatprep.subr.bf16.mxu0 0
        %539 = vmatpush1.bf16.msra.mxu0 0
        %540 = vmatprep.subr.bf16.mxu0 0
        %541 = vmatpush1.bf16.msra.mxu0 0
        %542 = vmatprep.subr.bf16.mxu0 0
        %543 = vmatpush1.bf16.msra.mxu0 0
        %544 = vmatprep.subr.bf16.mxu0 0
        %545 = vmatpush1.bf16.msra.mxu0 0
        %546 = vmatprep.subr.bf16.mxu0 0
        %547 = vmatpush1.bf16.msra.mxu0 0
        %548 = vmatprep.subr.bf16.mxu0 0
        %549 = vmatpush1.bf16.msra.mxu0 0
        %550 = vmatprep.subr.bf16.mxu0 0
        %551 = vmatpush1.bf16.msra.mxu0 0
        %552 = vmatprep.subr.bf16.mxu0 0
        %553 = vmatpush1.bf16.msra.mxu0 0
        %554 = vmatprep.subr.bf16.mxu0 0
        %555 = vmatpush1.bf16.msra.mxu0 0
        %556 = vmatprep.subr.bf16.mxu0 0
        %557 = vmatpush1.bf16.msra.mxu0 0
        %558 = vmatprep.subr.bf16.mxu0 0
        %559 = vmatpush1.bf16.msra.mxu0 0
        %560 = vmatprep.mubr.bf16.mxu0 0
        %561 = vmatmul.mubr.bf16.gmra.mrb[0].mxu0 %v481
        %v562 = vpop.f32.mrb[0].mxu0
        %v563 = vadd.f32 %v391, %v562
        %v564 = vpop.f32.mrb[0].mxu0
        %v565 = vpop.f32.mrb[0].mxu0
        %v566 = vadd.f32 %v391, %v565
        %v567 = vpop.f32.mrb[0].mxu0
        %568 = vmatprep.mubr.bf16.mxu0 0
        %569 = vmatmul.mubr.bf16.gmra.mrb[0].mxu0 %v484
        %v570 = vpop.f32.mrb[0].mxu0
        %v571 = vadd.f32 %v391, %v570
        %v572 = vpop.f32.mrb[0].mxu0
        %v573 = vpop.f32.mrb[0].mxu0
        %v574 = vadd.f32 %v391, %v573
        %v575 = vpop.f32.mrb[0].mxu0
        %576 = vmatprep.mubr.bf16.mxu0 0
        %577 = vmatmul.mubr.bf16.gmra.mrb[0].mxu0 %v487
        %v578 = vpop.f32.mrb[0].mxu0
        %v579 = vadd.f32 %v391, %v578
        %v580 = vpop.f32.mrb[0].mxu0
        %v581 = vpop.f32.mrb[0].mxu0
        %v582 = vadd.f32 %v391, %v581
        %v583 = vpop.f32.mrb[0].mxu0
        %584 = vmatprep.mubr.bf16.mxu0 0
        %585 = vmatmul.mubr.bf16.gmra.mrb[0].mxu0 %v490
        %v586 = vpop.f32.mrb[0].mxu0
        %v587 = vadd.f32 %v391, %v586
        %v588 = vpop.f32.mrb[0].mxu0
        %v589 = vpop.f32.mrb[0].mxu0
        %v590 = vadd.f32 %v391, %v589
        %v591 = vpop.f32.mrb[0].mxu0
        %592 = vmatprep.mubr.bf16.mxu0 0
        %593 = vmatmul.mubr.bf16.gmra.mrb[0].mxu0 %v493
        %v594 = vpop.f32.mrb[0].mxu0
        %v595 = vadd.f32 %v391, %v594
        %v596 = vpop.f32.mrb[0].mxu0
        %v597 = vpop.f32.mrb[0].mxu0
        %v598 = vadd.f32 %v391, %v597
        %v599 = vpop.f32.mrb[0].mxu0
        %600 = vmatprep.mubr.bf16.mxu0 0
        %601 = vmatmul.mubr.bf16.gmra.mrb[0].mxu0 %v496
        %v602 = vpop.f32.mrb[0].mxu0
        %v603 = vadd.f32 %v391, %v602
        %v604 = vpop.f32.mrb[0].mxu0
        %v605 = vpop.f32.mrb[0].mxu0
        %v606 = vadd.f32 %v391, %v605
        %v607 = vpop.f32.mrb[0].mxu0
        %608 = vmatprep.mubr.bf16.mxu0 0
        %609 = vmatmul.mubr.bf16.gmra.mrb[0].mxu0 %v499
        %v610 = vpop.f32.mrb[0].mxu0
        %v611 = vadd.f32 %v391, %v610
        %v612 = vpop.f32.mrb[0].mxu0
        %v613 = vpop.f32.mrb[0].mxu0
        %v614 = vadd.f32 %v391, %v613
        %v615 = vpop.f32.mrb[0].mxu0
        %616 = vmatprep.mubr.bf16.mxu0 0
        %617 = vmatmul.mubr.bf16.gmra.mrb[0].mxu0 %v502
        %v618 = vpop.f32.mrb[0].mxu0
        %v619 = vadd.f32 %v391, %v618
        %v620 = vpop.f32.mrb[0].mxu0
        %v621 = vpop.f32.mrb[0].mxu0
        %v622 = vadd.f32 %v391, %v621
        %v623 = vpop.f32.mrb[0].mxu0
        %624 = vmatprep.mubr.bf16.mxu0 0
        %625 = vmatmul.mubr.bf16.gmra.mrb[0].mxu0 %v505
        %v626 = vpop.f32.mrb[0].mxu0
        %v627 = vadd.f32 %v391, %v626
        %v628 = vpop.f32.mrb[0].mxu0
        %v629 = vpop.f32.mrb[0].mxu0
        %v630 = vadd.f32 %v391, %v629
        %v631 = vpop.f32.mrb[0].mxu0
        %632 = vmatprep.mubr.bf16.mxu0 0
        %633 = vmatmul.mubr.bf16.gmra.mrb[0].mxu0 %v508
        %v634 = vpop.f32.mrb[0].mxu0
        %v635 = vadd.f32 %v391, %v634
        %v636 = vpop.f32.mrb[0].mxu0
        %v637 = vpop.f32.mrb[0].mxu0
        %v638 = vadd.f32 %v391, %v637
        %v639 = vpop.f32.mrb[0].mxu0
        %640 = vmatprep.mubr.bf16.mxu0 0
        %641 = vmatmul.mubr.bf16.gmra.mrb[0].mxu0 %v511
        %v642 = vpop.f32.mrb[0].mxu0
        %v643 = vadd.f32 %v391, %v642
        %v644 = vpop.f32.mrb[0].mxu0
        %v645 = vpop.f32.mrb[0].mxu0
        %v646 = vadd.f32 %v391, %v645
        %v647 = vpop.f32.mrb[0].mxu0
        %648 = vmatprep.mubr.bf16.mxu0 0
        %649 = vmatmul.mubr.bf16.gmra.mrb[0].mxu0 %v514
        %v650 = vpop.f32.mrb[0].mxu0
        %v651 = vadd.f32 %v391, %v650
        %v652 = vpop.f32.mrb[0].mxu0
        %v653 = vpop.f32.mrb[0].mxu0
        %v654 = vadd.f32 %v391, %v653
        %v655 = vpop.f32.mrb[0].mxu0
        %656 = vmatprep.mubr.bf16.mxu0 0
        %657 = vmatmul.mubr.bf16.gmra.mrb[0].mxu0 %v517
        %v658 = vpop.f32.mrb[0].mxu0
        %v659 = vadd.f32 %v391, %v658
        %v660 = vpop.f32.mrb[0].mxu0
        %v661 = vpop.f32.mrb[0].mxu0
        %v662 = vadd.f32 %v391, %v661
        %v663 = vpop.f32.mrb[0].mxu0
        %664 = vmatprep.mubr.bf16.mxu0 0
        %665 = vmatmul.mubr.bf16.gmra.mrb[0].mxu0 %v520
        %v666 = vpop.f32.mrb[0].mxu0
        %v667 = vadd.f32 %v391, %v666
        %v668 = vpop.f32.mrb[0].mxu0
        %v669 = vpop.f32.mrb[0].mxu0
        %v670 = vadd.f32 %v391, %v669
        %v671 = vpop.f32.mrb[0].mxu0
        %672 = vmatprep.mubr.bf16.mxu0 0
        %673 = vmatmul.mubr.bf16.gmra.mrb[0].mxu0 %v523
        %v674 = vpop.f32.mrb[0].mxu0
        %v675 = vadd.f32 %v391, %v674
        %v676 = vpop.f32.mrb[0].mxu0
        %v677 = vpop.f32.mrb[0].mxu0
        %v678 = vadd.f32 %v391, %v677
        %v679 = vpop.f32.mrb[0].mxu0
        %680 = vmatprep.mubr.bf16.mxu0 0
        %681 = vmatmul.mubr.bf16.gmra.mrb[0].mxu0 %v526
        %v682 = vpop.f32.mrb[0].mxu0
        %v683 = vadd.f32 %v391, %v682
        %v684 = vpop.f32.mrb[0].mxu0
        %v685 = vpop.f32.mrb[0].mxu0
        %v686 = vadd.f32 %v391, %v685
        %v687 = vpop.f32.mrb[0].mxu0
        %688 = vdwg.mxu0
        %v689 = vld [vmem:[%s1] sm:$0xf]
        %v690 = vld [vmem:[%s1 + $0x4] sm:$0xf]
        %v691 = vld [vmem:[%s2] sm:$0x1]
        %v693 = vlaneseq
        %v694 = vshrl.u32 %v693, 7
        %v695 = vsub.s32 0, %v694
        %v696 = vrot.slane %v691, %v695
        %v700 = vunpack.c.l.b16 %v689
        %v701 = vunpack.c.l.b16 %v690
        %v702 = vpack.c.b16 %v701, %v700
        %704 = vmatprep.subr.bf16.mxu0 0
        %705 = vmatpush1.bf16.msra.mxu0 %v702
        %706 = vmatprep.subr.bf16.mxu0 0
        %707 = vmatpush1.bf16.msra.mxu0 0
        %708 = vmatprep.subr.bf16.mxu0 0
        %709 = vmatpush1.bf16.msra.mxu0 0
        %710 = vmatprep.subr.bf16.mxu0 0
        %711 = vmatpush1.bf16.msra.mxu0 0
        %712 = vmatprep.subr.bf16.mxu0 0
        %713 = vmatpush1.bf16.msra.mxu0 0
        %714 = vmatprep.subr.bf16.mxu0 0
        %715 = vmatpush1.bf16.msra.mxu0 0
        %716 = vmatprep.subr.bf16.mxu0 0
        %717 = vmatpush1.bf16.msra.mxu0 0
        %718 = vmatprep.subr.bf16.mxu0 0
        %719 = vmatpush1.bf16.msra.mxu0 0
        %720 = vmatprep.subr.bf16.mxu0 0
        %721 = vmatpush1.bf16.msra.mxu0 0
        %722 = vmatprep.subr.bf16.mxu0 0
        %723 = vmatpush1.bf16.msra.mxu0 0
        %724 = vmatprep.subr.bf16.mxu0 0
        %725 = vmatpush1.bf16.msra.mxu0 0
        %726 = vmatprep.subr.bf16.mxu0 0
        %727 = vmatpush1.bf16.msra.mxu0 0
        %728 = vmatprep.subr.bf16.mxu0 0
        %729 = vmatpush1.bf16.msra.mxu0 0
        %730 = vmatprep.subr.bf16.mxu0 0
        %731 = vmatpush1.bf16.msra.mxu0 0
        %732 = vmatprep.subr.bf16.mxu0 0
        %733 = vmatpush1.bf16.msra.mxu0 0
        %734 = vmatprep.subr.bf16.mxu0 0
        %735 = vmatpush1.bf16.msra.mxu0 0
        %736 = vmatprep.mubr.bf16.mxu0 0
        %737 = vmatmul.mubr.bf16.gmra.mrb[0].mxu0 %v481
        %v738 = vpop.f32.mrb[0].mxu0
        %v739 = vadd.f32 %v696, %v738
        %v740 = vpop.f32.mrb[0].mxu0
        %v741 = vpop.f32.mrb[0].mxu0
        %v742 = vadd.f32 %v696, %v741
        %v743 = vpop.f32.mrb[0].mxu0
        %744 = vmatprep.mubr.bf16.mxu0 0
        %745 = vmatmul.mubr.bf16.gmra.mrb[0].mxu0 %v484
        %v746 = vpop.f32.mrb[0].mxu0
        %v747 = vadd.f32 %v696, %v746
        %v748 = vpop.f32.mrb[0].mxu0
        %v749 = vpop.f32.mrb[0].mxu0
        %v750 = vadd.f32 %v696, %v749
        %v751 = vpop.f32.mrb[0].mxu0
        %752 = vmatprep.mubr.bf16.mxu0 0
        %753 = vmatmul.mubr.bf16.gmra.mrb[0].mxu0 %v487
        %v754 = vpop.f32.mrb[0].mxu0
        %v755 = vadd.f32 %v696, %v754
        %v756 = vpop.f32.mrb[0].mxu0
        %v757 = vpop.f32.mrb[0].mxu0
        %v758 = vadd.f32 %v696, %v757
        %v759 = vpop.f32.mrb[0].mxu0
        %760 = vmatprep.mubr.bf16.mxu0 0
        %761 = vmatmul.mubr.bf16.gmra.mrb[0].mxu0 %v490
        %v762 = vpop.f32.mrb[0].mxu0
        %v763 = vadd.f32 %v696, %v762
        %v764 = vpop.f32.mrb[0].mxu0
        %v765 = vpop.f32.mrb[0].mxu0
        %v766 = vadd.f32 %v696, %v765
        %v767 = vpop.f32.mrb[0].mxu0
        %768 = vmatprep.mubr.bf16.mxu0 0
        %769 = vmatmul.mubr.bf16.gmra.mrb[0].mxu0 %v493
        %v770 = vpop.f32.mrb[0].mxu0
        %v771 = vadd.f32 %v696, %v770
        %v772 = vpop.f32.mrb[0].mxu0
        %v773 = vpop.f32.mrb[0].mxu0
        %v774 = vadd.f32 %v696, %v773
        %v775 = vpop.f32.mrb[0].mxu0
        %776 = vmatprep.mubr.bf16.mxu0 0
        %777 = vmatmul.mubr.bf16.gmra.mrb[0].mxu0 %v496
        %v778 = vpop.f32.mrb[0].mxu0
        %v779 = vadd.f32 %v696, %v778
        %v780 = vpop.f32.mrb[0].mxu0
        %v781 = vpop.f32.mrb[0].mxu0
        %v782 = vadd.f32 %v696, %v781
        %v783 = vpop.f32.mrb[0].mxu0
        %784 = vmatprep.mubr.bf16.mxu0 0
        %785 = vmatmul.mubr.bf16.gmra.mrb[0].mxu0 %v499
        %v786 = vpop.f32.mrb[0].mxu0
        %v787 = vadd.f32 %v696, %v786
        %v788 = vpop.f32.mrb[0].mxu0
        %v789 = vpop.f32.mrb[0].mxu0
        %v790 = vadd.f32 %v696, %v789
        %v791 = vpop.f32.mrb[0].mxu0
        %792 = vmatprep.mubr.bf16.mxu0 0
        %793 = vmatmul.mubr.bf16.gmra.mrb[0].mxu0 %v502
        %v794 = vpop.f32.mrb[0].mxu0
        %v795 = vadd.f32 %v696, %v794
        %v796 = vpop.f32.mrb[0].mxu0
        %v797 = vpop.f32.mrb[0].mxu0
        %v798 = vadd.f32 %v696, %v797
        %v799 = vpop.f32.mrb[0].mxu0
        %800 = vmatprep.mubr.bf16.mxu0 0
        %801 = vmatmul.mubr.bf16.gmra.mrb[0].mxu0 %v505
        %v802 = vpop.f32.mrb[0].mxu0
        %v803 = vadd.f32 %v696, %v802
        %v804 = vpop.f32.mrb[0].mxu0
        %v805 = vpop.f32.mrb[0].mxu0
        %v806 = vadd.f32 %v696, %v805
        %v807 = vpop.f32.mrb[0].mxu0
        %808 = vmatprep.mubr.bf16.mxu0 0
        %809 = vmatmul.mubr.bf16.gmra.mrb[0].mxu0 %v508
        %v810 = vpop.f32.mrb[0].mxu0
        %v811 = vadd.f32 %v696, %v810
        %v812 = vpop.f32.mrb[0].mxu0
        %v813 = vpop.f32.mrb[0].mxu0
        %v814 = vadd.f32 %v696, %v813
        %v815 = vpop.f32.mrb[0].mxu0
        %816 = vmatprep.mubr.bf16.mxu0 0
        %817 = vmatmul.mubr.bf16.gmra.mrb[0].mxu0 %v511
        %v818 = vpop.f32.mrb[0].mxu0
        %v819 = vadd.f32 %v696, %v818
        %v820 = vpop.f32.mrb[0].mxu0
        %v821 = vpop.f32.mrb[0].mxu0
        %v822 = vadd.f32 %v696, %v821
        %v823 = vpop.f32.mrb[0].mxu0
        %824 = vmatprep.mubr.bf16.mxu0 0
        %825 = vmatmul.mubr.bf16.gmra.mrb[0].mxu0 %v514
        %v826 = vpop.f32.mrb[0].mxu0
        %v827 = vadd.f32 %v696, %v826
        %v828 = vpop.f32.mrb[0].mxu0
        %v829 = vpop.f32.mrb[0].mxu0
        %v830 = vadd.f32 %v696, %v829
        %v831 = vpop.f32.mrb[0].mxu0
        %832 = vmatprep.mubr.bf16.mxu0 0
        %833 = vmatmul.mubr.bf16.gmra.mrb[0].mxu0 %v517
        %v834 = vpop.f32.mrb[0].mxu0
        %v835 = vadd.f32 %v696, %v834
        %v836 = vpop.f32.mrb[0].mxu0
        %v837 = vpop.f32.mrb[0].mxu0
        %v838 = vadd.f32 %v696, %v837
        %v839 = vpop.f32.mrb[0].mxu0
        %840 = vmatprep.mubr.bf16.mxu0 0
        %841 = vmatmul.mubr.bf16.gmra.mrb[0].mxu0 %v520
        %v842 = vpop.f32.mrb[0].mxu0
        %v843 = vadd.f32 %v696, %v842
        %v844 = vpop.f32.mrb[0].mxu0
        %v845 = vpop.f32.mrb[0].mxu0
        %v846 = vadd.f32 %v696, %v845
        %v847 = vpop.f32.mrb[0].mxu0
        %848 = vmatprep.mubr.bf16.mxu0 0
        %849 = vmatmul.mubr.bf16.gmra.mrb[0].mxu0 %v523
        %v850 = vpop.f32.mrb[0].mxu0
        %v851 = vadd.f32 %v696, %v850
        %v852 = vpop.f32.mrb[0].mxu0
        %v853 = vpop.f32.mrb[0].mxu0
        %v854 = vadd.f32 %v696, %v853
        %v855 = vpop.f32.mrb[0].mxu0
        %856 = vmatprep.mubr.bf16.mxu0 0
        %857 = vmatmul.mubr.bf16.gmra.mrb[0].mxu0 %v526
        %v858 = vpop.f32.mrb[0].mxu0
        %v859 = vadd.f32 %v696, %v858
        %v860 = vpop.f32.mrb[0].mxu0
        %v861 = vpop.f32.mrb[0].mxu0
        %v862 = vadd.f32 %v696, %v861
        %v863 = vpop.f32.mrb[0].mxu0
        %864 = vdwg.mxu0
        %v865 = vmax.f32 %v739, 0.0
        %v866 = vmax.f32 %v742, 0.0
        %v867 = vmax.f32 %v747, 0.0
        %v868 = vmax.f32 %v750, 0.0
        %v869 = vmax.f32 %v755, 0.0
        %v870 = vmax.f32 %v758, 0.0
        %v871 = vmax.f32 %v763, 0.0
        %v872 = vmax.f32 %v766, 0.0
        %v873 = vmax.f32 %v771, 0.0
        %v874 = vmax.f32 %v774, 0.0
        %v875 = vmax.f32 %v779, 0.0
        %v876 = vmax.f32 %v782, 0.0
        %v877 = vmax.f32 %v787, 0.0
        %v878 = vmax.f32 %v790, 0.0
        %v879 = vmax.f32 %v795, 0.0
        %v880 = vmax.f32 %v798, 0.0
        %v881 = vmax.f32 %v803, 0.0
        %v882 = vmax.f32 %v806, 0.0
        %v883 = vmax.f32 %v811, 0.0
        %v884 = vmax.f32 %v814, 0.0
        %v885 = vmax.f32 %v819, 0.0
        %v886 = vmax.f32 %v822, 0.0
        %v887 = vmax.f32 %v827, 0.0
        %v888 = vmax.f32 %v830, 0.0
        %v889 = vmax.f32 %v835, 0.0
        %v890 = vmax.f32 %v838, 0.0
        %v891 = vmax.f32 %v843, 0.0
        %v892 = vmax.f32 %v846, 0.0
        %v893 = vmax.f32 %v851, 0.0
        %v894 = vmax.f32 %v854, 0.0
        %v895 = vmax.f32 %v859, 0.0
        %v896 = vmax.f32 %v862, 0.0
        %v897 = vlaneseq
        %v898 = vshrl.u32 %v897, 7
        %v899 = vadd.s32 %v898, 8
        %vm900 = vcmp.eq.s32.totalorder %v898, 0
        %vm901 = vcmp.eq.s32.totalorder %v899, 0
        %v902 = vrot.slane %v865, 7
        %v903 = vrot.slane %v867, 7
        %v904 = vrot.slane %v869, 7
        %v905 = vrot.slane %v871, 7
        %v906 = vrot.slane %v873, 7
        %v907 = vrot.slane %v875, 7
        %v908 = vrot.slane %v877, 7
        %v909 = vrot.slane %v879, 7
        %v910 = vrot.slane %v881, 7
        %v911 = vrot.slane %v883, 7
        %v912 = vrot.slane %v885, 7
        %v913 = vrot.slane %v887, 7
        %v914 = vrot.slane %v889, 7
        %v915 = vrot.slane %v891, 7
        %v916 = vrot.slane %v893, 7
        %v917 = vrot.slane %v895, 7
        %v918 = vrot.slane %v866, 7
        %v919 = vrot.slane %v868, 7
        %v920 = vrot.slane %v870, 7
        %v921 = vrot.slane %v872, 7
        %v922 = vrot.slane %v874, 7
        %v923 = vrot.slane %v876, 7
        %v924 = vrot.slane %v878, 7
        %v925 = vrot.slane %v880, 7
        %v926 = vrot.slane %v882, 7
        %v927 = vrot.slane %v884, 7
        %v928 = vrot.slane %v886, 7
        %v929 = vrot.slane %v888, 7
        %v930 = vrot.slane %v890, 7
        %v931 = vrot.slane %v892, 7
        %v932 = vrot.slane %v894, 7
        %v933 = vrot.slane %v896, 7
        %vm934 = vcmp.lt.s32.totalorder %v898, 1
        %v935 = vsel %vm934, %v902, %v918
        %v936 = vsel %vm934, %v903, %v919
        %v937 = vsel %vm934, %v904, %v920
        %v938 = vsel %vm934, %v905, %v921
        %v939 = vsel %vm934, %v906, %v922
        %v940 = vsel %vm934, %v907, %v923
        %v941 = vsel %vm934, %v908, %v924
        %v942 = vsel %vm934, %v909, %v925
        %v943 = vsel %vm934, %v910, %v926
        %v944 = vsel %vm934, %v911, %v927
        %v945 = vsel %vm934, %v912, %v928
        %v946 = vsel %vm934, %v913, %v929
        %v947 = vsel %vm934, %v914, %v930
        %v948 = vsel %vm934, %v915, %v931
        %v949 = vsel %vm934, %v916, %v932
        %v950 = vsel %vm934, %v917, %v933
        %v951 = vsel %vm934, %v918, %v902
        %v952 = vsel %vm934, %v919, %v903
        %v953 = vsel %vm934, %v920, %v904
        %v954 = vsel %vm934, %v921, %v905
        %v955 = vsel %vm934, %v922, %v906
        %v956 = vsel %vm934, %v923, %v907
        %v957 = vsel %vm934, %v924, %v908
        %v958 = vsel %vm934, %v925, %v909
        %v959 = vsel %vm934, %v926, %v910
        %v960 = vsel %vm934, %v927, %v911
        %v961 = vsel %vm934, %v928, %v912
        %v962 = vsel %vm934, %v929, %v913
        %v963 = vsel %vm934, %v930, %v914
        %v964 = vsel %vm934, %v931, %v915
        %v965 = vsel %vm934, %v932, %v916
        %v966 = vsel %vm934, %v933, %v917
        %v967 = vsel %vm900, 1, 0
        %v968 = vsel %vm901, 1, 0
        %vm969 = vcmp.eq.s32.totalorder %v967, 1
        %vm970 = vcmp.eq.s32.totalorder %v968, 1
        %v971 = vsel %vm969, 0.0, %v951
        %v972 = vsel %vm970, 0.0, %v935
        %v973 = vsel %vm969, 0.0, %v952
        %v974 = vsel %vm970, 0.0, %v936
        %v975 = vsel %vm969, 0.0, %v953
        %v976 = vsel %vm970, 0.0, %v937
        %v977 = vsel %vm969, 0.0, %v954
        %v978 = vsel %vm970, 0.0, %v938
        %v979 = vsel %vm969, 0.0, %v955
        %v980 = vsel %vm970, 0.0, %v939
        %v981 = vsel %vm969, 0.0, %v956
        %v982 = vsel %vm970, 0.0, %v940
        %v983 = vsel %vm969, 0.0, %v957
        %v984 = vsel %vm970, 0.0, %v941
        %v985 = vsel %vm969, 0.0, %v958
        %v986 = vsel %vm970, 0.0, %v942
        %v987 = vsel %vm969, 0.0, %v959
        %v988 = vsel %vm970, 0.0, %v943
        %v989 = vsel %vm969, 0.0, %v960
        %v990 = vsel %vm970, 0.0, %v944
        %v991 = vsel %vm969, 0.0, %v961
        %v992 = vsel %vm970, 0.0, %v945
        %v993 = vsel %vm969, 0.0, %v962
        %v994 = vsel %vm970, 0.0, %v946
        %v995 = vsel %vm969, 0.0, %v963
        %v996 = vsel %vm970, 0.0, %v947
        %v997 = vsel %vm969, 0.0, %v964
        %v998 = vsel %vm970, 0.0, %v948
        %v999 = vsel %vm969, 0.0, %v965
        %v1000 = vsel %vm970, 0.0, %v949
        %v1001 = vsel %vm969, 0.0, %v966
        %v1002 = vsel %vm970, 0.0, %v950
        %vm1003 = vcmp.eq.s32.totalorder %v898, 15
        %vm1004 = vcmp.eq.s32.totalorder %v899, 15
        %v1005 = vrot.slane %v865, 1
        %v1006 = vrot.slane %v867, 1
        %v1007 = vrot.slane %v869, 1
        %v1008 = vrot.slane %v871, 1
        %v1009 = vrot.slane %v873, 1
        %v1010 = vrot.slane %v875, 1
        %v1011 = vrot.slane %v877, 1
        %v1012 = vrot.slane %v879, 1
        %v1013 = vrot.slane %v881, 1
        %v1014 = vrot.slane %v883, 1
        %v1015 = vrot.slane %v885, 1
        %v1016 = vrot.slane %v887, 1
        %v1017 = vrot.slane %v889, 1
        %v1018 = vrot.slane %v891, 1
        %v1019 = vrot.slane %v893, 1
        %v1020 = vrot.slane %v895, 1
        %v1021 = vrot.slane %v866, 1
        %v1022 = vrot.slane %v868, 1
        %v1023 = vrot.slane %v870, 1
        %v1024 = vrot.slane %v872, 1
        %v1025 = vrot.slane %v874, 1
        %v1026 = vrot.slane %v876, 1
        %v1027 = vrot.slane %v878, 1
        %v1028 = vrot.slane %v880, 1
        %v1029 = vrot.slane %v882, 1
        %v1030 = vrot.slane %v884, 1
        %v1031 = vrot.slane %v886, 1
        %v1032 = vrot.slane %v888, 1
        %v1033 = vrot.slane %v890, 1
        %v1034 = vrot.slane %v892, 1
        %v1035 = vrot.slane %v894, 1
        %v1036 = vrot.slane %v896, 1
        %vm1037 = vcmp.lt.s32.totalorder %v898, 7
        %v1038 = vsel %vm1037, %v1005, %v1021
        %v1039 = vsel %vm1037, %v1006, %v1022
        %v1040 = vsel %vm1037, %v1007, %v1023
        %v1041 = vsel %vm1037, %v1008, %v1024
        %v1042 = vsel %vm1037, %v1009, %v1025
        %v1043 = vsel %vm1037, %v1010, %v1026
        %v1044 = vsel %vm1037, %v1011, %v1027
        %v1045 = vsel %vm1037, %v1012, %v1028
        %v1046 = vsel %vm1037, %v1013, %v1029
        %v1047 = vsel %vm1037, %v1014, %v1030
        %v1048 = vsel %vm1037, %v1015, %v1031
        %v1049 = vsel %vm1037, %v1016, %v1032
        %v1050 = vsel %vm1037, %v1017, %v1033
        %v1051 = vsel %vm1037, %v1018, %v1034
        %v1052 = vsel %vm1037, %v1019, %v1035
        %v1053 = vsel %vm1037, %v1020, %v1036
        %v1054 = vsel %vm1037, %v1021, %v1005
        %v1055 = vsel %vm1037, %v1022, %v1006
        %v1056 = vsel %vm1037, %v1023, %v1007
        %v1057 = vsel %vm1037, %v1024, %v1008
        %v1058 = vsel %vm1037, %v1025, %v1009
        %v1059 = vsel %vm1037, %v1026, %v1010
        %v1060 = vsel %vm1037, %v1027, %v1011
        %v1061 = vsel %vm1037, %v1028, %v1012
        %v1062 = vsel %vm1037, %v1029, %v1013
        %v1063 = vsel %vm1037, %v1030, %v1014
        %v1064 = vsel %vm1037, %v1031, %v1015
        %v1065 = vsel %vm1037, %v1032, %v1016
        %v1066 = vsel %vm1037, %v1033, %v1017
        %v1067 = vsel %vm1037, %v1034, %v1018
        %v1068 = vsel %vm1037, %v1035, %v1019
        %v1069 = vsel %vm1037, %v1036, %v1020
        %v1070 = vsel %vm1003, 1, 0
        %v1071 = vsel %vm1004, 1, 0
        %vm1072 = vcmp.eq.s32.totalorder %v1070, 1
        %vm1073 = vcmp.eq.s32.totalorder %v1071, 1
        %v1074 = vsel %vm1072, 0.0, %v1038
        %v1075 = vsel %vm1073, 0.0, %v1054
        %v1076 = vsel %vm1072, 0.0, %v1039
        %v1077 = vsel %vm1073, 0.0, %v1055
        %v1078 = vsel %vm1072, 0.0, %v1040
        %v1079 = vsel %vm1073, 0.0, %v1056
        %v1080 = vsel %vm1072, 0.0, %v1041
        %v1081 = vsel %vm1073, 0.0, %v1057
        %v1082 = vsel %vm1072, 0.0, %v1042
        %v1083 = vsel %vm1073, 0.0, %v1058
        %v1084 = vsel %vm1072, 0.0, %v1043
        %v1085 = vsel %vm1073, 0.0, %v1059
        %v1086 = vsel %vm1072, 0.0, %v1044
        %v1087 = vsel %vm1073, 0.0, %v1060
        %v1088 = vsel %vm1072, 0.0, %v1045
        %v1089 = vsel %vm1073, 0.0, %v1061
        %v1090 = vsel %vm1072, 0.0, %v1046
        %v1091 = vsel %vm1073, 0.0, %v1062
        %v1092 = vsel %vm1072, 0.0, %v1047
        %v1093 = vsel %vm1073, 0.0, %v1063
        %v1094 = vsel %vm1072, 0.0, %v1048
        %v1095 = vsel %vm1073, 0.0, %v1064
        %v1096 = vsel %vm1072, 0.0, %v1049
        %v1097 = vsel %vm1073, 0.0, %v1065
        %v1098 = vsel %vm1072, 0.0, %v1050
        %v1099 = vsel %vm1073, 0.0, %v1066
        %v1100 = vsel %vm1072, 0.0, %v1051
        %v1101 = vsel %vm1073, 0.0, %v1067
        %v1102 = vsel %vm1072, 0.0, %v1052
        %v1103 = vsel %vm1073, 0.0, %v1068
        %v1104 = vsel %vm1072, 0.0, %v1053
        %v1105 = vsel %vm1073, 0.0, %v1069
        %1138 = vrot.lane.b32.xlu0 %v865, 8
        %v1139 = vpop.permute.xlu0 %1138
        %1140 = vrot.lane.b32.xlu0 %v866, 8
        %v1141 = vpop.permute.xlu0 %1140
        %1142 = vrot.lane.b32.xlu0 %v867, 8
        %v1143 = vpop.permute.xlu0 %1142
        %1144 = vrot.lane.b32.xlu0 %v868, 8
        %v1145 = vpop.permute.xlu0 %1144
        %1146 = vrot.lane.b32.xlu0 %v869, 8
        %v1147 = vpop.permute.xlu0 %1146
        %1148 = vrot.lane.b32.xlu0 %v870, 8
        %v1149 = vpop.permute.xlu0 %1148
        %1150 = vrot.lane.b32.xlu0 %v871, 8
        %v1151 = vpop.permute.xlu0 %1150
        %1152 = vrot.lane.b32.xlu0 %v872, 8
        %v1153 = vpop.permute.xlu0 %1152
        %1154 = vrot.lane.b32.xlu0 %v873, 8
        %v1155 = vpop.permute.xlu0 %1154
        %1156 = vrot.lane.b32.xlu0 %v874, 8
        %v1157 = vpop.permute.xlu0 %1156
        %1158 = vrot.lane.b32.xlu0 %v875, 8
        %v1159 = vpop.permute.xlu0 %1158
        %1160 = vrot.lane.b32.xlu0 %v876, 8
        %v1161 = vpop.permute.xlu0 %1160
        %1162 = vrot.lane.b32.xlu0 %v877, 8
        %v1163 = vpop.permute.xlu0 %1162
        %1164 = vrot.lane.b32.xlu0 %v878, 8
        %v1165 = vpop.permute.xlu0 %1164
        %1166 = vrot.lane.b32.xlu0 %v879, 8
        %v1167 = vpop.permute.xlu0 %1166
        %1168 = vrot.lane.b32.xlu0 %v880, 8
        %v1169 = vpop.permute.xlu0 %1168
        %1170 = vrot.lane.b32.xlu0 %v881, 8
        %v1171 = vpop.permute.xlu0 %1170
        %1172 = vrot.lane.b32.xlu0 %v882, 8
        %v1173 = vpop.permute.xlu0 %1172
        %1174 = vrot.lane.b32.xlu0 %v883, 8
        %v1175 = vpop.permute.xlu0 %1174
        %1176 = vrot.lane.b32.xlu0 %v884, 8
        %v1177 = vpop.permute.xlu0 %1176
        %1178 = vrot.lane.b32.xlu0 %v885, 8
        %v1179 = vpop.permute.xlu0 %1178
        %1180 = vrot.lane.b32.xlu0 %v886, 8
        %v1181 = vpop.permute.xlu0 %1180
        %1182 = vrot.lane.b32.xlu0 %v887, 8
        %v1183 = vpop.permute.xlu0 %1182
        %1184 = vrot.lane.b32.xlu0 %v888, 8
        %v1185 = vpop.permute.xlu0 %1184
        %1186 = vrot.lane.b32.xlu0 %v889, 8
        %v1187 = vpop.permute.xlu0 %1186
        %1188 = vrot.lane.b32.xlu0 %v890, 8
        %v1189 = vpop.permute.xlu0 %1188
        %1190 = vrot.lane.b32.xlu0 %v891, 8
        %v1191 = vpop.permute.xlu0 %1190
        %1192 = vrot.lane.b32.xlu0 %v892, 8
        %v1193 = vpop.permute.xlu0 %1192
        %1194 = vrot.lane.b32.xlu0 %v893, 8
        %v1195 = vpop.permute.xlu0 %1194
        %1196 = vrot.lane.b32.xlu0 %v894, 8
        %v1197 = vpop.permute.xlu0 %1196
        %1198 = vrot.lane.b32.xlu0 %v895, 8
        %v1199 = vpop.permute.xlu0 %1198
        %1200 = vrot.lane.b32.xlu0 %v896, 8
        %v1201 = vpop.permute.xlu0 %1200
        %1266 = vrot.lane.b32.xlu0 %v1074, 16
        %v1267 = vpop.permute.xlu0 %1266
        %1268 = vrot.lane.b32.xlu0 %v1075, 16
        %v1269 = vpop.permute.xlu0 %1268
        %1270 = vrot.lane.b32.xlu0 %v1076, 16
        %v1271 = vpop.permute.xlu0 %1270
        %1272 = vrot.lane.b32.xlu0 %v1077, 16
        %v1273 = vpop.permute.xlu0 %1272
        %1274 = vrot.lane.b32.xlu0 %v1078, 16
        %v1275 = vpop.permute.xlu0 %1274
        %1276 = vrot.lane.b32.xlu0 %v1079, 16
        %v1277 = vpop.permute.xlu0 %1276
        %1278 = vrot.lane.b32.xlu0 %v1080, 16
        %v1279 = vpop.permute.xlu0 %1278
        %1280 = vrot.lane.b32.xlu0 %v1081, 16
        %v1281 = vpop.permute.xlu0 %1280
        %1282 = vrot.lane.b32.xlu0 %v1082, 16
        %v1283 = vpop.permute.xlu0 %1282
        %1284 = vrot.lane.b32.xlu0 %v1083, 16
        %v1285 = vpop.permute.xlu0 %1284
        %1286 = vrot.lane.b32.xlu0 %v1084, 16
        %v1287 = vpop.permute.xlu0 %1286
        %1288 = vrot.lane.b32.xlu0 %v1085, 16
        %v1289 = vpop.permute.xlu0 %1288
        %1290 = vrot.lane.b32.xlu0 %v1086, 16
        %v1291 = vpop.permute.xlu0 %1290
        %1292 = vrot.lane.b32.xlu0 %v1087, 16
        %v1293 = vpop.permute.xlu0 %1292
        %1294 = vrot.lane.b32.xlu0 %v1088, 16
        %v1295 = vpop.permute.xlu0 %1294
        %1296 = vrot.lane.b32.xlu0 %v1089, 16
        %v1297 = vpop.permute.xlu0 %1296
        %1298 = vrot.lane.b32.xlu0 %v1090, 16
        %v1299 = vpop.permute.xlu0 %1298
        %1300 = vrot.lane.b32.xlu0 %v1091, 16
        %v1301 = vpop.permute.xlu0 %1300
        %1302 = vrot.lane.b32.xlu0 %v1092, 16
        %v1303 = vpop.permute.xlu0 %1302
        %1304 = vrot.lane.b32.xlu0 %v1093, 16
        %v1305 = vpop.permute.xlu0 %1304
        %1306 = vrot.lane.b32.xlu0 %v1094, 16
        %v1307 = vpop.permute.xlu0 %1306
        %1308 = vrot.lane.b32.xlu0 %v1095, 16
        %v1309 = vpop.permute.xlu0 %1308
        %1310 = vrot.lane.b32.xlu0 %v1096, 16
        %v1311 = vpop.permute.xlu0 %1310
        %1312 = vrot.lane.b32.xlu0 %v1097, 16
        %v1313 = vpop.permute.xlu0 %1312
        %1314 = vrot.lane.b32.xlu0 %v1098, 16
        %v1315 = vpop.permute.xlu0 %1314
        %1316 = vrot.lane.b32.xlu0 %v1099, 16
        %v1317 = vpop.permute.xlu0 %1316
        %1318 = vrot.lane.b32.xlu0 %v1100, 16
        %v1319 = vpop.permute.xlu0 %1318
        %1320 = vrot.lane.b32.xlu0 %v1101, 16
        %v1321 = vpop.permute.xlu0 %1320
        %1322 = vrot.lane.b32.xlu0 %v1102, 16
        %v1323 = vpop.permute.xlu0 %1322
        %1324 = vrot.lane.b32.xlu0 %v1103, 16
        %v1325 = vpop.permute.xlu0 %1324
        %1326 = vrot.lane.b32.xlu0 %v1104, 16
        %v1327 = vpop.permute.xlu0 %1326
        %1328 = vrot.lane.b32.xlu0 %v1105, 16
        %v1329 = vpop.permute.xlu0 %1328
        %vm1362 = vcmask 64512
        %v1363 = vsel %vm1362, %v971, %v1139
        %v1364 = vsel %vm1362, %v972, %v1141
        %v1365 = vsel %vm1362, %v973, %v1143
        %v1366 = vsel %vm1362, %v974, %v1145
        %v1367 = vsel %vm1362, %v975, %v1147
        %v1368 = vsel %vm1362, %v976, %v1149
        %v1369 = vsel %vm1362, %v977, %v1151
        %v1370 = vsel %vm1362, %v978, %v1153
        %v1371 = vsel %vm1362, %v979, %v1155
        %v1372 = vsel %vm1362, %v980, %v1157
        %v1373 = vsel %vm1362, %v981, %v1159
        %v1374 = vsel %vm1362, %v982, %v1161
        %v1375 = vsel %vm1362, %v983, %v1163
        %v1376 = vsel %vm1362, %v984, %v1165
        %v1377 = vsel %vm1362, %v985, %v1167
        %v1378 = vsel %vm1362, %v986, %v1169
        %v1379 = vsel %vm1362, %v987, %v1171
        %v1380 = vsel %vm1362, %v988, %v1173
        %v1381 = vsel %vm1362, %v989, %v1175
        %v1382 = vsel %vm1362, %v990, %v1177
        %v1383 = vsel %vm1362, %v991, %v1179
        %v1384 = vsel %vm1362, %v992, %v1181
        %v1385 = vsel %vm1362, %v993, %v1183
        %v1386 = vsel %vm1362, %v994, %v1185
        %v1387 = vsel %vm1362, %v995, %v1187
        %v1388 = vsel %vm1362, %v996, %v1189
        %v1389 = vsel %vm1362, %v997, %v1191
        %v1390 = vsel %vm1362, %v998, %v1193
        %v1391 = vsel %vm1362, %v999, %v1195
        %v1392 = vsel %vm1362, %v1000, %v1197
        %v1393 = vsel %vm1362, %v1001, %v1199
        %v1394 = vsel %vm1362, %v1002, %v1201
        %v1395 = vsel %vm479, %v1363, %v1267
        %v1396 = vsel %vm479, %v1364, %v1269
        %v1397 = vsel %vm479, %v1365, %v1271
        %v1398 = vsel %vm479, %v1366, %v1273
        %v1399 = vsel %vm479, %v1367, %v1275
        %v1400 = vsel %vm479, %v1368, %v1277
        %v1401 = vsel %vm479, %v1369, %v1279
        %v1402 = vsel %vm479, %v1370, %v1281
        %v1403 = vsel %vm479, %v1371, %v1283
        %v1404 = vsel %vm479, %v1372, %v1285
        %v1405 = vsel %vm479, %v1373, %v1287
        %v1406 = vsel %vm479, %v1374, %v1289
        %v1407 = vsel %vm479, %v1375, %v1291
        %v1408 = vsel %vm479, %v1376, %v1293
        %v1409 = vsel %vm479, %v1377, %v1295
        %v1410 = vsel %vm479, %v1378, %v1297
        %v1411 = vsel %vm479, %v1379, %v1299
        %v1412 = vsel %vm479, %v1380, %v1301
        %v1413 = vsel %vm479, %v1381, %v1303
        %v1414 = vsel %vm479, %v1382, %v1305
        %v1415 = vsel %vm479, %v1383, %v1307
        %v1416 = vsel %vm479, %v1384, %v1309
        %v1417 = vsel %vm479, %v1385, %v1311
        %v1418 = vsel %vm479, %v1386, %v1313
        %v1419 = vsel %vm479, %v1387, %v1315
        %v1420 = vsel %vm479, %v1388, %v1317
        %v1421 = vsel %vm479, %v1389, %v1319
        %v1422 = vsel %vm479, %v1390, %v1321
        %v1423 = vsel %vm479, %v1391, %v1323
        %v1424 = vsel %vm479, %v1392, %v1325
        %v1425 = vsel %vm479, %v1393, %v1327
        %v1426 = vsel %vm479, %v1394, %v1329
        %v1427 = vpack.c.bf16 %v1396, %v1395
        %v1428 = vpack.c.bf16 %v1398, %v1397
        %v1429 = vpack.c.bf16 %v1400, %v1399
        %v1430 = vpack.c.bf16 %v1402, %v1401
        %v1431 = vpack.c.bf16 %v1404, %v1403
        %v1432 = vpack.c.bf16 %v1406, %v1405
        %v1433 = vpack.c.bf16 %v1408, %v1407
        %v1434 = vpack.c.bf16 %v1410, %v1409
        %v1435 = vpack.c.bf16 %v1412, %v1411
        %v1436 = vpack.c.bf16 %v1414, %v1413
        %v1437 = vpack.c.bf16 %v1416, %v1415
        %v1438 = vpack.c.bf16 %v1418, %v1417
        %v1439 = vpack.c.bf16 %v1420, %v1419
        %v1440 = vpack.c.bf16 %v1422, %v1421
        %v1441 = vpack.c.bf16 %v1424, %v1423
        %v1442 = vpack.c.bf16 %v1426, %v1425
        %1459 = vrot.lane.b32.xlu0 %v1427, 24
        %v1460 = vpop.permute.xlu0 %1459
        %1461 = vrot.lane.b32.xlu0 %v1428, 24
        %v1462 = vpop.permute.xlu0 %1461
        %1463 = vrot.lane.b32.xlu0 %v1429, 24
        %v1464 = vpop.permute.xlu0 %1463
        %1465 = vrot.lane.b32.xlu0 %v1430, 24
        %v1466 = vpop.permute.xlu0 %1465
        %1467 = vrot.lane.b32.xlu0 %v1431, 24
        %v1468 = vpop.permute.xlu0 %1467
        %1469 = vrot.lane.b32.xlu0 %v1432, 24
        %v1470 = vpop.permute.xlu0 %1469
        %1471 = vrot.lane.b32.xlu0 %v1433, 24
        %v1472 = vpop.permute.xlu0 %1471
        %1473 = vrot.lane.b32.xlu0 %v1434, 24
        %v1474 = vpop.permute.xlu0 %1473
        %1475 = vrot.lane.b32.xlu0 %v1435, 24
        %v1476 = vpop.permute.xlu0 %1475
        %1477 = vrot.lane.b32.xlu0 %v1436, 24
        %v1478 = vpop.permute.xlu0 %1477
        %1479 = vrot.lane.b32.xlu0 %v1437, 24
        %v1480 = vpop.permute.xlu0 %1479
        %1481 = vrot.lane.b32.xlu0 %v1438, 24
        %v1482 = vpop.permute.xlu0 %1481
        %1483 = vrot.lane.b32.xlu0 %v1439, 24
        %v1484 = vpop.permute.xlu0 %1483
        %1485 = vrot.lane.b32.xlu0 %v1440, 24
        %v1486 = vpop.permute.xlu0 %1485
        %1487 = vrot.lane.b32.xlu0 %v1441, 24
        %v1488 = vpop.permute.xlu0 %1487
        %1489 = vrot.lane.b32.xlu0 %v1442, 24
        %v1490 = vpop.permute.xlu0 %1489
        %1492 = vrot.lane.b32.xlu0 %v1428, 48
        %v1493 = vpop.permute.xlu0 %1492
        %1494 = vrot.lane.b32.xlu0 %v1429, 48
        %v1495 = vpop.permute.xlu0 %1494
        %1496 = vrot.lane.b32.xlu0 %v1430, 48
        %v1497 = vpop.permute.xlu0 %1496
        %1498 = vrot.lane.b32.xlu0 %v1431, 48
        %v1499 = vpop.permute.xlu0 %1498
        %1500 = vrot.lane.b32.xlu0 %v1432, 48
        %v1501 = vpop.permute.xlu0 %1500
        %1502 = vrot.lane.b32.xlu0 %v1433, 48
        %v1503 = vpop.permute.xlu0 %1502
        %1504 = vrot.lane.b32.xlu0 %v1434, 48
        %v1505 = vpop.permute.xlu0 %1504
        %1506 = vrot.lane.b32.xlu0 %v1435, 48
        %v1507 = vpop.permute.xlu0 %1506
        %1508 = vrot.lane.b32.xlu0 %v1436, 48
        %v1509 = vpop.permute.xlu0 %1508
        %1510 = vrot.lane.b32.xlu0 %v1437, 48
        %v1511 = vpop.permute.xlu0 %1510
        %1512 = vrot.lane.b32.xlu0 %v1438, 48
        %v1513 = vpop.permute.xlu0 %1512
        %1514 = vrot.lane.b32.xlu0 %v1439, 48
        %v1515 = vpop.permute.xlu0 %1514
        %1516 = vrot.lane.b32.xlu0 %v1440, 48
        %v1517 = vpop.permute.xlu0 %1516
        %1518 = vrot.lane.b32.xlu0 %v1441, 48
        %v1519 = vpop.permute.xlu0 %1518
        %1520 = vrot.lane.b32.xlu0 %v1442, 48
        %v1521 = vpop.permute.xlu0 %1520
        %1522 = vrot.lane.b32.xlu0 0, 48
        %v1523 = vpop.permute.xlu0 %1522
        %vm1524 = vcmask 195584
        %v1527 = vsel %vm1524, 0, %v1460
        %v1530 = vsel %vm1524, %v1427, %v1462
        %v1533 = vsel %vm1524, %v1428, %v1464
        %v1536 = vsel %vm1524, %v1429, %v1466
        %v1539 = vsel %vm1524, %v1430, %v1468
        %v1542 = vsel %vm1524, %v1431, %v1470
        %v1545 = vsel %vm1524, %v1432, %v1472
        %v1548 = vsel %vm1524, %v1433, %v1474
        %v1551 = vsel %vm1524, %v1434, %v1476
        %v1554 = vsel %vm1524, %v1435, %v1478
        %v1557 = vsel %vm1524, %v1436, %v1480
        %v1560 = vsel %vm1524, %v1437, %v1482
        %v1563 = vsel %vm1524, %v1438, %v1484
        %v1566 = vsel %vm1524, %v1439, %v1486
        %v1569 = vsel %vm1524, %v1440, %v1488
        %v1572 = vsel %vm1524, %v1441, %v1490
        %vm1573 = vcmask 392192
        %v1575 = vsel %vm1573, %v1527, %v1493
        %v1577 = vsel %vm1573, %v1530, %v1495
        %v1579 = vsel %vm1573, %v1533, %v1497
        %v1581 = vsel %vm1573, %v1536, %v1499
        %v1583 = vsel %vm1573, %v1539, %v1501
        %v1585 = vsel %vm1573, %v1542, %v1503
        %v1587 = vsel %vm1573, %v1545, %v1505
        %v1589 = vsel %vm1573, %v1548, %v1507
        %v1591 = vsel %vm1573, %v1551, %v1509
        %v1593 = vsel %vm1573, %v1554, %v1511
        %v1595 = vsel %vm1573, %v1557, %v1513
        %v1597 = vsel %vm1573, %v1560, %v1515
        %v1599 = vsel %vm1573, %v1563, %v1517
        %v1601 = vsel %vm1573, %v1566, %v1519
        %v1603 = vsel %vm1573, %v1569, %v1521
        %v1605 = vsel %vm1573, %v1572, %v1523
        %v1606 = vld [vmem:[%s3] sm:$0xf]
        %v1607 = vld [vmem:[%s3 + $0x4] sm:$0xf]
        %v1608 = vld [vmem:[%s3 + $0x8] sm:$0xf]
        %v1609 = vld [vmem:[%s3 + $0xc] sm:$0xf]
        %v1610 = vld [vmem:[%s3 + $0x10] sm:$0xf]
        %v1611 = vld [vmem:[%s3 + $0x14] sm:$0xf]
        %v1612 = vld [vmem:[%s3 + $0x18] sm:$0xf]
        %v1613 = vld [vmem:[%s3 + $0x1c] sm:$0xf]
        %v1614 = vld [vmem:[%s3 + $0x20] sm:$0xf]
        %v1615 = vld [vmem:[%s4] sm:$0x1]
        %v1617 = vlaneseq
        %v1618 = vshrl.u32 %v1617, 7
        %v1619 = vsub.s32 0, %v1618
        %v1620 = vrot.slane %v1615, %v1619
        %v1631 = vunpack.c.l.b16 %v1606
        %v1632 = vunpack.c.l.b16 %v1607
        %v1633 = vunpack.c.l.b16 %v1608
        %v1634 = vunpack.c.l.b16 %v1609
        %v1635 = vunpack.c.l.b16 %v1610
        %v1636 = vunpack.c.l.b16 %v1611
        %v1637 = vunpack.c.l.b16 %v1612
        %v1638 = vunpack.c.l.b16 %v1613
        %v1639 = vunpack.c.l.b16 %v1614
        %v1640 = vpack.c.b16 %v1632, %v1631
        %v1641 = vpack.c.b16 %v1634, %v1633
        %v1642 = vpack.c.b16 %v1636, %v1635
        %v1643 = vpack.c.b16 %v1638, %v1637
        %v1644 = vpack.c.b16 %v1639, %v1639
        %vm1649 = vcmask 588800
        %v1650 = vsel %vm1649, %v1575, 0
        %v1652 = vsel %vm1649, %v1577, 0
        %v1654 = vsel %vm1649, %v1579, 0
        %v1656 = vsel %vm1649, %v1581, 0
        %v1658 = vsel %vm1649, %v1583, 0
        %v1660 = vsel %vm1649, %v1585, 0
        %v1662 = vsel %vm1649, %v1587, 0
        %v1664 = vsel %vm1649, %v1589, 0
        %v1666 = vsel %vm1649, %v1591, 0
        %v1668 = vsel %vm1649, %v1593, 0
        %v1670 = vsel %vm1649, %v1595, 0
        %v1672 = vsel %vm1649, %v1597, 0
        %v1674 = vsel %vm1649, %v1599, 0
        %v1676 = vsel %vm1649, %v1601, 0
        %v1678 = vsel %vm1649, %v1603, 0
        %v1680 = vsel %vm1649, %v1605, 0
        %vm1682 = vcmask 1043456
        %v1684 = vsel %vm1682, %v1644, 0
        %1686 = vmatprep.subr.bf16.mxu0 0
        %1687 = vmatpush1.bf16.msra.mxu0 %v1640
        %1688 = vmatprep.subr.bf16.mxu0 0
        %1689 = vmatpush1.bf16.msra.mxu0 %v1641
        %1690 = vmatprep.subr.bf16.mxu0 0
        %1691 = vmatpush1.bf16.msra.mxu0 %v1642
        %1692 = vmatprep.subr.bf16.mxu0 0
        %1693 = vmatpush1.bf16.msra.mxu0 %v1643
        %1694 = vmatprep.subr.bf16.mxu0 0
        %1695 = vmatpush1.bf16.msra.mxu0 %v1684
        %1696 = vmatprep.subr.bf16.mxu0 0
        %1697 = vmatpush1.bf16.msra.mxu0 0
        %1698 = vmatprep.subr.bf16.mxu0 0
        %1699 = vmatpush1.bf16.msra.mxu0 0
        %1700 = vmatprep.subr.bf16.mxu0 0
        %1701 = vmatpush1.bf16.msra.mxu0 0
        %1702 = vmatprep.subr.bf16.mxu0 0
        %1703 = vmatpush1.bf16.msra.mxu0 0
        %1704 = vmatprep.subr.bf16.mxu0 0
        %1705 = vmatpush1.bf16.msra.mxu0 0
        %1706 = vmatprep.subr.bf16.mxu0 0
        %1707 = vmatpush1.bf16.msra.mxu0 0
        %1708 = vmatprep.subr.bf16.mxu0 0
        %1709 = vmatpush1.bf16.msra.mxu0 0
        %1710 = vmatprep.subr.bf16.mxu0 0
        %1711 = vmatpush1.bf16.msra.mxu0 0
        %1712 = vmatprep.subr.bf16.mxu0 0
        %1713 = vmatpush1.bf16.msra.mxu0 0
        %1714 = vmatprep.subr.bf16.mxu0 0
        %1715 = vmatpush1.bf16.msra.mxu0 0
        %1716 = vmatprep.subr.bf16.mxu0 0
        %1717 = vmatpush1.bf16.msra.mxu0 0
        %1718 = vmatprep.mubr.bf16.mxu0 0
        %1719 = vmatmul.mubr.bf16.gmra.mrb[0].mxu0 %v1650
        %v1720 = vpop.f32.mrb[0].mxu0
        %v1721 = vadd.f32 %v1620, %v1720
        %v1722 = vpop.f32.mrb[0].mxu0
        %v1723 = vpop.f32.mrb[0].mxu0
        %v1724 = vadd.f32 %v1620, %v1723
        %v1725 = vpop.f32.mrb[0].mxu0
        %1726 = vmatprep.mubr.bf16.mxu0 0
        %1727 = vmatmul.mubr.bf16.gmra.mrb[0].mxu0 %v1652
        %v1728 = vpop.f32.mrb[0].mxu0
        %v1729 = vadd.f32 %v1620, %v1728
        %v1730 = vpop.f32.mrb[0].mxu0
        %v1731 = vpop.f32.mrb[0].mxu0
        %v1732 = vadd.f32 %v1620, %v1731
        %v1733 = vpop.f32.mrb[0].mxu0
        %1734 = vmatprep.mubr.bf16.mxu0 0
        %1735 = vmatmul.mubr.bf16.gmra.mrb[0].mxu0 %v1654
        %v1736 = vpop.f32.mrb[0].mxu0
        %v1737 = vadd.f32 %v1620, %v1736
        %v1738 = vpop.f32.mrb[0].mxu0
        %v1739 = vpop.f32.mrb[0].mxu0
        %v1740 = vadd.f32 %v1620, %v1739
        %v1741 = vpop.f32.mrb[0].mxu0
        %1742 = vmatprep.mubr.bf16.mxu0 0
        %1743 = vmatmul.mubr.bf16.gmra.mrb[0].mxu0 %v1656
        %v1744 = vpop.f32.mrb[0].mxu0
        %v1745 = vadd.f32 %v1620, %v1744
        %v1746 = vpop.f32.mrb[0].mxu0
        %v1747 = vpop.f32.mrb[0].mxu0
        %v1748 = vadd.f32 %v1620, %v1747
        %v1749 = vpop.f32.mrb[0].mxu0
        %1750 = vmatprep.mubr.bf16.mxu0 0
        %1751 = vmatmul.mubr.bf16.gmra.mrb[0].mxu0 %v1658
        %v1752 = vpop.f32.mrb[0].mxu0
        %v1753 = vadd.f32 %v1620, %v1752
        %v1754 = vpop.f32.mrb[0].mxu0
        %v1755 = vpop.f32.mrb[0].mxu0
        %v1756 = vadd.f32 %v1620, %v1755
        %v1757 = vpop.f32.mrb[0].mxu0
        %1758 = vmatprep.mubr.bf16.mxu0 0
        %1759 = vmatmul.mubr.bf16.gmra.mrb[0].mxu0 %v1660
        %v1760 = vpop.f32.mrb[0].mxu0
        %v1761 = vadd.f32 %v1620, %v1760
        %v1762 = vpop.f32.mrb[0].mxu0
        %v1763 = vpop.f32.mrb[0].mxu0
        %v1764 = vadd.f32 %v1620, %v1763
        %v1765 = vpop.f32.mrb[0].mxu0
        %1766 = vmatprep.mubr.bf16.mxu0 0
        %1767 = vmatmul.mubr.bf16.gmra.mrb[0].mxu0 %v1662
        %v1768 = vpop.f32.mrb[0].mxu0
        %v1769 = vadd.f32 %v1620, %v1768
        %v1770 = vpop.f32.mrb[0].mxu0
        %v1771 = vpop.f32.mrb[0].mxu0
        %v1772 = vadd.f32 %v1620, %v1771
        %v1773 = vpop.f32.mrb[0].mxu0
        %1774 = vmatprep.mubr.bf16.mxu0 0
        %1775 = vmatmul.mubr.bf16.gmra.mrb[0].mxu0 %v1664
        %v1776 = vpop.f32.mrb[0].mxu0
        %v1777 = vadd.f32 %v1620, %v1776
        %v1778 = vpop.f32.mrb[0].mxu0
        %v1779 = vpop.f32.mrb[0].mxu0
        %v1780 = vadd.f32 %v1620, %v1779
        %v1781 = vpop.f32.mrb[0].mxu0
        %1782 = vmatprep.mubr.bf16.mxu0 0
        %1783 = vmatmul.mubr.bf16.gmra.mrb[0].mxu0 %v1666
        %v1784 = vpop.f32.mrb[0].mxu0
        %v1785 = vadd.f32 %v1620, %v1784
        %v1786 = vpop.f32.mrb[0].mxu0
        %v1787 = vpop.f32.mrb[0].mxu0
        %v1788 = vadd.f32 %v1620, %v1787
        %v1789 = vpop.f32.mrb[0].mxu0
        %1790 = vmatprep.mubr.bf16.mxu0 0
        %1791 = vmatmul.mubr.bf16.gmra.mrb[0].mxu0 %v1668
        %v1792 = vpop.f32.mrb[0].mxu0
        %v1793 = vadd.f32 %v1620, %v1792
        %v1794 = vpop.f32.mrb[0].mxu0
        %v1795 = vpop.f32.mrb[0].mxu0
        %v1796 = vadd.f32 %v1620, %v1795
        %v1797 = vpop.f32.mrb[0].mxu0
        %1798 = vmatprep.mubr.bf16.mxu0 0
        %1799 = vmatmul.mubr.bf16.gmra.mrb[0].mxu0 %v1670
        %v1800 = vpop.f32.mrb[0].mxu0
        %v1801 = vadd.f32 %v1620, %v1800
        %v1802 = vpop.f32.mrb[0].mxu0
        %v1803 = vpop.f32.mrb[0].mxu0
        %v1804 = vadd.f32 %v1620, %v1803
        %v1805 = vpop.f32.mrb[0].mxu0
        %1806 = vmatprep.mubr.bf16.mxu0 0
        %1807 = vmatmul.mubr.bf16.gmra.mrb[0].mxu0 %v1672
        %v1808 = vpop.f32.mrb[0].mxu0
        %v1809 = vadd.f32 %v1620, %v1808
        %v1810 = vpop.f32.mrb[0].mxu0
        %v1811 = vpop.f32.mrb[0].mxu0
        %v1812 = vadd.f32 %v1620, %v1811
        %v1813 = vpop.f32.mrb[0].mxu0
        %1814 = vmatprep.mubr.bf16.mxu0 0
        %1815 = vmatmul.mubr.bf16.gmra.mrb[0].mxu0 %v1674
        %v1816 = vpop.f32.mrb[0].mxu0
        %v1817 = vadd.f32 %v1620, %v1816
        %v1818 = vpop.f32.mrb[0].mxu0
        %v1819 = vpop.f32.mrb[0].mxu0
        %v1820 = vadd.f32 %v1620, %v1819
        %v1821 = vpop.f32.mrb[0].mxu0
        %1822 = vmatprep.mubr.bf16.mxu0 0
        %1823 = vmatmul.mubr.bf16.gmra.mrb[0].mxu0 %v1676
        %v1824 = vpop.f32.mrb[0].mxu0
        %v1825 = vadd.f32 %v1620, %v1824
        %v1826 = vpop.f32.mrb[0].mxu0
        %v1827 = vpop.f32.mrb[0].mxu0
        %v1828 = vadd.f32 %v1620, %v1827
        %v1829 = vpop.f32.mrb[0].mxu0
        %1830 = vmatprep.mubr.bf16.mxu0 0
        %1831 = vmatmul.mubr.bf16.gmra.mrb[0].mxu0 %v1678
        %v1832 = vpop.f32.mrb[0].mxu0
        %v1833 = vadd.f32 %v1620, %v1832
        %v1834 = vpop.f32.mrb[0].mxu0
        %v1835 = vpop.f32.mrb[0].mxu0
        %v1836 = vadd.f32 %v1620, %v1835
        %v1837 = vpop.f32.mrb[0].mxu0
        %1838 = vmatprep.mubr.bf16.mxu0 0
        %1839 = vmatmul.mubr.bf16.gmra.mrb[0].mxu0 %v1680
        %v1840 = vpop.f32.mrb[0].mxu0
        %v1841 = vadd.f32 %v1620, %v1840
        %v1842 = vpop.f32.mrb[0].mxu0
        %v1843 = vpop.f32.mrb[0].mxu0
        %v1844 = vadd.f32 %v1620, %v1843
        %v1845 = vpop.f32.mrb[0].mxu0
        %1846 = vdwg.mxu0
        %v1847 = vmax.f32 %v1721, 0.0
        %v1848 = vmax.f32 %v1724, 0.0
        %v1849 = vmax.f32 %v1729, 0.0
        %v1850 = vmax.f32 %v1732, 0.0
        %v1851 = vmax.f32 %v1737, 0.0
        %v1852 = vmax.f32 %v1740, 0.0
        %v1853 = vmax.f32 %v1745, 0.0
        %v1854 = vmax.f32 %v1748, 0.0
        %v1855 = vmax.f32 %v1753, 0.0
        %v1856 = vmax.f32 %v1756, 0.0
        %v1857 = vmax.f32 %v1761, 0.0
        %v1858 = vmax.f32 %v1764, 0.0
        %v1859 = vmax.f32 %v1769, 0.0
        %v1860 = vmax.f32 %v1772, 0.0
        %v1861 = vmax.f32 %v1777, 0.0
        %v1862 = vmax.f32 %v1780, 0.0
        %v1863 = vmax.f32 %v1785, 0.0
        %v1864 = vmax.f32 %v1788, 0.0
        %v1865 = vmax.f32 %v1793, 0.0
        %v1866 = vmax.f32 %v1796, 0.0
        %v1867 = vmax.f32 %v1801, 0.0
        %v1868 = vmax.f32 %v1804, 0.0
        %v1869 = vmax.f32 %v1809, 0.0
        %v1870 = vmax.f32 %v1812, 0.0
        %v1871 = vmax.f32 %v1817, 0.0
        %v1872 = vmax.f32 %v1820, 0.0
        %v1873 = vmax.f32 %v1825, 0.0
        %v1874 = vmax.f32 %v1828, 0.0
        %v1875 = vmax.f32 %v1833, 0.0
        %v1876 = vmax.f32 %v1836, 0.0
        %v1877 = vmax.f32 %v1841, 0.0
        %v1878 = vmax.f32 %v1844, 0.0
        %v1879 = vpack.c.bf16 %v1848, %v1847
        %v1880 = vpack.c.bf16 %v1850, %v1849
        %v1881 = vpack.c.bf16 %v1852, %v1851
        %v1882 = vpack.c.bf16 %v1854, %v1853
        %v1883 = vpack.c.bf16 %v1856, %v1855
        %v1884 = vpack.c.bf16 %v1858, %v1857
        %v1885 = vpack.c.bf16 %v1860, %v1859
        %v1886 = vpack.c.bf16 %v1862, %v1861
        %v1887 = vpack.c.bf16 %v1864, %v1863
        %v1888 = vpack.c.bf16 %v1866, %v1865
        %v1889 = vpack.c.bf16 %v1868, %v1867
        %v1890 = vpack.c.bf16 %v1870, %v1869
        %v1891 = vpack.c.bf16 %v1872, %v1871
        %v1892 = vpack.c.bf16 %v1874, %v1873
        %v1893 = vpack.c.bf16 %v1876, %v1875
        %v1894 = vpack.c.bf16 %v1878, %v1877
        %v1895 = vld [vmem:[%s5] sm:$0xf]
        %v1896 = vld [vmem:[%s6] sm:$0x1]
        %v1898 = vlaneseq
        %v1899 = vshrl.u32 %v1898, 7
        %v1900 = vsub.s32 0, %v1899
        %v1901 = vrot.slane %v1896, %v1900
        %v1904 = vsel %vm1362, %v1879, 0
        %v1907 = vsel %vm1362, %v1880, 0
        %v1910 = vsel %vm1362, %v1881, 0
        %v1913 = vsel %vm1362, %v1882, 0
        %v1916 = vsel %vm1362, %v1883, 0
        %v1919 = vsel %vm1362, %v1884, 0
        %v1922 = vsel %vm1362, %v1885, 0
        %v1925 = vsel %vm1362, %v1886, 0
        %v1928 = vsel %vm1362, %v1887, 0
        %v1931 = vsel %vm1362, %v1888, 0
        %v1934 = vsel %vm1362, %v1889, 0
        %v1937 = vsel %vm1362, %v1890, 0
        %v1940 = vsel %vm1362, %v1891, 0
        %v1943 = vsel %vm1362, %v1892, 0
        %v1946 = vsel %vm1362, %v1893, 0
        %v1949 = vsel %vm1362, %v1894, 0
        %v1952 = vsel %vm1682, %v1895, 0
        %1954 = vmatprep.subr.bf16.mxu0 0
        %1955 = vmatpush1.bf16.msra.mxu0 %v1952
        %1956 = vmatprep.subr.bf16.mxu0 0
        %1957 = vmatpush1.bf16.msra.mxu0 0
        %1958 = vmatprep.subr.bf16.mxu0 0
        %1959 = vmatpush1.bf16.msra.mxu0 0
        %1960 = vmatprep.subr.bf16.mxu0 0
        %1961 = vmatpush1.bf16.msra.mxu0 0
        %1962 = vmatprep.subr.bf16.mxu0 0
        %1963 = vmatpush1.bf16.msra.mxu0 0
        %1964 = vmatprep.subr.bf16.mxu0 0
        %1965 = vmatpush1.bf16.msra.mxu0 0
        %1966 = vmatprep.subr.bf16.mxu0 0
        %1967 = vmatpush1.bf16.msra.mxu0 0
        %1968 = vmatprep.subr.bf16.mxu0 0
        %1969 = vmatpush1.bf16.msra.mxu0 0
        %1970 = vmatprep.subr.bf16.mxu0 0
        %1971 = vmatpush1.bf16.msra.mxu0 0
        %1972 = vmatprep.subr.bf16.mxu0 0
        %1973 = vmatpush1.bf16.msra.mxu0 0
        %1974 = vmatprep.subr.bf16.mxu0 0
        %1975 = vmatpush1.bf16.msra.mxu0 0
        %1976 = vmatprep.subr.bf16.mxu0 0
        %1977 = vmatpush1.bf16.msra.mxu0 0
        %1978 = vmatprep.subr.bf16.mxu0 0
        %1979 = vmatpush1.bf16.msra.mxu0 0
        %1980 = vmatprep.subr.bf16.mxu0 0
        %1981 = vmatpush1.bf16.msra.mxu0 0
        %1982 = vmatprep.subr.bf16.mxu0 0
        %1983 = vmatpush1.bf16.msra.mxu0 0
        %1984 = vmatprep.subr.bf16.mxu0 0
        %1985 = vmatpush1.bf16.msra.mxu0 0
        %1986 = vmatprep.mubr.bf16.mxu0 0
        %1987 = vmatmul.mubr.bf16.gmra.mrb[0].mxu0 %v1904
        %v1988 = vpop.f32.mrb[0].mxu0
        %v1989 = vadd.f32 %v1901, %v1988
        %v1990 = vpop.f32.mrb[0].mxu0
        %v1991 = vpop.f32.mrb[0].mxu0
        %v1992 = vadd.f32 %v1901, %v1991
        %v1993 = vpop.f32.mrb[0].mxu0
        %1994 = vmatprep.mubr.bf16.mxu0 0
        %1995 = vmatmul.mubr.bf16.gmra.mrb[0].mxu0 %v1907
        %v1996 = vpop.f32.mrb[0].mxu0
        %v1997 = vadd.f32 %v1901, %v1996
        %v1998 = vpop.f32.mrb[0].mxu0
        %v1999 = vpop.f32.mrb[0].mxu0
        %v2000 = vadd.f32 %v1901, %v1999
        %v2001 = vpop.f32.mrb[0].mxu0
        %2002 = vmatprep.mubr.bf16.mxu0 0
        %2003 = vmatmul.mubr.bf16.gmra.mrb[0].mxu0 %v1910
        %v2004 = vpop.f32.mrb[0].mxu0
        %v2005 = vadd.f32 %v1901, %v2004
        %v2006 = vpop.f32.mrb[0].mxu0
        %v2007 = vpop.f32.mrb[0].mxu0
        %v2008 = vadd.f32 %v1901, %v2007
        %v2009 = vpop.f32.mrb[0].mxu0
        %2010 = vmatprep.mubr.bf16.mxu0 0
        %2011 = vmatmul.mubr.bf16.gmra.mrb[0].mxu0 %v1913
        %v2012 = vpop.f32.mrb[0].mxu0
        %v2013 = vadd.f32 %v1901, %v2012
        %v2014 = vpop.f32.mrb[0].mxu0
        %v2015 = vpop.f32.mrb[0].mxu0
        %v2016 = vadd.f32 %v1901, %v2015
        %v2017 = vpop.f32.mrb[0].mxu0
        %2018 = vmatprep.mubr.bf16.mxu0 0
        %2019 = vmatmul.mubr.bf16.gmra.mrb[0].mxu0 %v1916
        %v2020 = vpop.f32.mrb[0].mxu0
        %v2021 = vadd.f32 %v1901, %v2020
        %v2022 = vpop.f32.mrb[0].mxu0
        %v2023 = vpop.f32.mrb[0].mxu0
        %v2024 = vadd.f32 %v1901, %v2023
        %v2025 = vpop.f32.mrb[0].mxu0
        %2026 = vmatprep.mubr.bf16.mxu0 0
        %2027 = vmatmul.mubr.bf16.gmra.mrb[0].mxu0 %v1919
        %v2028 = vpop.f32.mrb[0].mxu0
        %v2029 = vadd.f32 %v1901, %v2028
        %v2030 = vpop.f32.mrb[0].mxu0
        %v2031 = vpop.f32.mrb[0].mxu0
        %v2032 = vadd.f32 %v1901, %v2031
        %v2033 = vpop.f32.mrb[0].mxu0
        %2034 = vmatprep.mubr.bf16.mxu0 0
        %2035 = vmatmul.mubr.bf16.gmra.mrb[0].mxu0 %v1922
        %v2036 = vpop.f32.mrb[0].mxu0
        %v2037 = vadd.f32 %v1901, %v2036
        %v2038 = vpop.f32.mrb[0].mxu0
        %v2039 = vpop.f32.mrb[0].mxu0
        %v2040 = vadd.f32 %v1901, %v2039
        %v2041 = vpop.f32.mrb[0].mxu0
        %2042 = vmatprep.mubr.bf16.mxu0 0
        %2043 = vmatmul.mubr.bf16.gmra.mrb[0].mxu0 %v1925
        %v2044 = vpop.f32.mrb[0].mxu0
        %v2045 = vadd.f32 %v1901, %v2044
        %v2046 = vpop.f32.mrb[0].mxu0
        %v2047 = vpop.f32.mrb[0].mxu0
        %v2048 = vadd.f32 %v1901, %v2047
        %v2049 = vpop.f32.mrb[0].mxu0
        %2050 = vmatprep.mubr.bf16.mxu0 0
        %2051 = vmatmul.mubr.bf16.gmra.mrb[0].mxu0 %v1928
        %v2052 = vpop.f32.mrb[0].mxu0
        %v2053 = vadd.f32 %v1901, %v2052
        %v2054 = vpop.f32.mrb[0].mxu0
        %v2055 = vpop.f32.mrb[0].mxu0
        %v2056 = vadd.f32 %v1901, %v2055
        %v2057 = vpop.f32.mrb[0].mxu0
        %2058 = vmatprep.mubr.bf16.mxu0 0
        %2059 = vmatmul.mubr.bf16.gmra.mrb[0].mxu0 %v1931
        %v2060 = vpop.f32.mrb[0].mxu0
        %v2061 = vadd.f32 %v1901, %v2060
        %v2062 = vpop.f32.mrb[0].mxu0
        %v2063 = vpop.f32.mrb[0].mxu0
        %v2064 = vadd.f32 %v1901, %v2063
        %v2065 = vpop.f32.mrb[0].mxu0
        %2066 = vmatprep.mubr.bf16.mxu0 0
        %2067 = vmatmul.mubr.bf16.gmra.mrb[0].mxu0 %v1934
        %v2068 = vpop.f32.mrb[0].mxu0
        %v2069 = vadd.f32 %v1901, %v2068
        %v2070 = vpop.f32.mrb[0].mxu0
        %v2071 = vpop.f32.mrb[0].mxu0
        %v2072 = vadd.f32 %v1901, %v2071
        %v2073 = vpop.f32.mrb[0].mxu0
        %2074 = vmatprep.mubr.bf16.mxu0 0
        %2075 = vmatmul.mubr.bf16.gmra.mrb[0].mxu0 %v1937
        %v2076 = vpop.f32.mrb[0].mxu0
        %v2077 = vadd.f32 %v1901, %v2076
        %v2078 = vpop.f32.mrb[0].mxu0
        %v2079 = vpop.f32.mrb[0].mxu0
        %v2080 = vadd.f32 %v1901, %v2079
        %v2081 = vpop.f32.mrb[0].mxu0
        %2082 = vmatprep.mubr.bf16.mxu0 0
        %2083 = vmatmul.mubr.bf16.gmra.mrb[0].mxu0 %v1940
        %v2084 = vpop.f32.mrb[0].mxu0
        %v2085 = vadd.f32 %v1901, %v2084
        %v2086 = vpop.f32.mrb[0].mxu0
        %v2087 = vpop.f32.mrb[0].mxu0
        %v2088 = vadd.f32 %v1901, %v2087
        %v2089 = vpop.f32.mrb[0].mxu0
        %2090 = vmatprep.mubr.bf16.mxu0 0
        %2091 = vmatmul.mubr.bf16.gmra.mrb[0].mxu0 %v1943
        %v2092 = vpop.f32.mrb[0].mxu0
        %v2093 = vadd.f32 %v1901, %v2092
        %v2094 = vpop.f32.mrb[0].mxu0
        %v2095 = vpop.f32.mrb[0].mxu0
        %v2096 = vadd.f32 %v1901, %v2095
        %v2097 = vpop.f32.mrb[0].mxu0
        %2098 = vmatprep.mubr.bf16.mxu0 0
        %2099 = vmatmul.mubr.bf16.gmra.mrb[0].mxu0 %v1946
        %v2100 = vpop.f32.mrb[0].mxu0
        %v2101 = vadd.f32 %v1901, %v2100
        %v2102 = vpop.f32.mrb[0].mxu0
        %v2103 = vpop.f32.mrb[0].mxu0
        %v2104 = vadd.f32 %v1901, %v2103
        %v2105 = vpop.f32.mrb[0].mxu0
        %2106 = vmatprep.mubr.bf16.mxu0 0
        %2107 = vmatmul.mubr.bf16.gmra.mrb[0].mxu0 %v1949
        %v2108 = vpop.f32.mrb[0].mxu0
        %v2109 = vadd.f32 %v1901, %v2108
        %v2110 = vpop.f32.mrb[0].mxu0
        %v2111 = vpop.f32.mrb[0].mxu0
        %v2112 = vadd.f32 %v1901, %v2111
        %v2113 = vpop.f32.mrb[0].mxu0
        %2114 = vdwg.mxu0
        %v2115 = vadd.f32 %v1989, %v563
        %v2116 = vadd.f32 %v1992, %v566
        %v2117 = vadd.f32 %v1997, %v571
        %v2118 = vadd.f32 %v2000, %v574
        %v2119 = vadd.f32 %v2005, %v579
        %v2120 = vadd.f32 %v2008, %v582
        %v2121 = vadd.f32 %v2013, %v587
        %v2122 = vadd.f32 %v2016, %v590
        %v2123 = vadd.f32 %v2021, %v595
        %v2124 = vadd.f32 %v2024, %v598
        %v2125 = vadd.f32 %v2029, %v603
        %v2126 = vadd.f32 %v2032, %v606
        %v2127 = vadd.f32 %v2037, %v611
        %v2128 = vadd.f32 %v2040, %v614
        %v2129 = vadd.f32 %v2045, %v619
        %v2130 = vadd.f32 %v2048, %v622
        %v2131 = vadd.f32 %v2053, %v627
        %v2132 = vadd.f32 %v2056, %v630
        %v2133 = vadd.f32 %v2061, %v635
        %v2134 = vadd.f32 %v2064, %v638
        %v2135 = vadd.f32 %v2069, %v643
        %v2136 = vadd.f32 %v2072, %v646
        %v2137 = vadd.f32 %v2077, %v651
        %v2138 = vadd.f32 %v2080, %v654
        %v2139 = vadd.f32 %v2085, %v659
        %v2140 = vadd.f32 %v2088, %v662
        %v2141 = vadd.f32 %v2093, %v667
        %v2142 = vadd.f32 %v2096, %v670
        %v2143 = vadd.f32 %v2101, %v675
        %v2144 = vadd.f32 %v2104, %v678
        %v2145 = vadd.f32 %v2109, %v683
        %v2146 = vadd.f32 %v2112, %v686
        %v2147 = vmax.f32 %v2115, 0.0
        %v2148 = vmax.f32 %v2116, 0.0
        %v2149 = vmax.f32 %v2117, 0.0
        %v2150 = vmax.f32 %v2118, 0.0
        %v2151 = vmax.f32 %v2119, 0.0
        %v2152 = vmax.f32 %v2120, 0.0
        %v2153 = vmax.f32 %v2121, 0.0
        %v2154 = vmax.f32 %v2122, 0.0
        %v2155 = vmax.f32 %v2123, 0.0
        %v2156 = vmax.f32 %v2124, 0.0
        %v2157 = vmax.f32 %v2125, 0.0
        %v2158 = vmax.f32 %v2126, 0.0
        %v2159 = vmax.f32 %v2127, 0.0
        %v2160 = vmax.f32 %v2128, 0.0
        %v2161 = vmax.f32 %v2129, 0.0
        %v2162 = vmax.f32 %v2130, 0.0
        %v2163 = vmax.f32 %v2131, 0.0
        %v2164 = vmax.f32 %v2132, 0.0
        %v2165 = vmax.f32 %v2133, 0.0
        %v2166 = vmax.f32 %v2134, 0.0
        %v2167 = vmax.f32 %v2135, 0.0
        %v2168 = vmax.f32 %v2136, 0.0
        %v2169 = vmax.f32 %v2137, 0.0
        %v2170 = vmax.f32 %v2138, 0.0
        %v2171 = vmax.f32 %v2139, 0.0
        %v2172 = vmax.f32 %v2140, 0.0
        %v2173 = vmax.f32 %v2141, 0.0
        %v2174 = vmax.f32 %v2142, 0.0
        %v2175 = vmax.f32 %v2143, 0.0
        %v2176 = vmax.f32 %v2144, 0.0
        %v2177 = vmax.f32 %v2145, 0.0
        %v2178 = vmax.f32 %v2146, 0.0
        %v2179 = vpack.c.bf16 %v2148, %v2147
        %v2180 = vpack.c.bf16 %v2150, %v2149
        %v2181 = vpack.c.bf16 %v2152, %v2151
        %v2182 = vpack.c.bf16 %v2154, %v2153
        %v2183 = vpack.c.bf16 %v2156, %v2155
        %v2184 = vpack.c.bf16 %v2158, %v2157
        %v2185 = vpack.c.bf16 %v2160, %v2159
        %v2186 = vpack.c.bf16 %v2162, %v2161
        %v2187 = vpack.c.bf16 %v2164, %v2163
        %v2188 = vpack.c.bf16 %v2166, %v2165
        %v2189 = vpack.c.bf16 %v2168, %v2167
        %v2190 = vpack.c.bf16 %v2170, %v2169
        %v2191 = vpack.c.bf16 %v2172, %v2171
        %v2192 = vpack.c.bf16 %v2174, %v2173
        %v2193 = vpack.c.bf16 %v2176, %v2175
        %v2194 = vpack.c.bf16 %v2178, %v2177
        %v2211 = vunpack.c.l.b16 %v2179
        %v2212 = vunpack.c.h.b16 %v2179
        %v2213 = vunpack.c.l.b16 %v2180
        %v2214 = vunpack.c.h.b16 %v2180
        %v2215 = vunpack.c.l.b16 %v2181
        %v2216 = vunpack.c.h.b16 %v2181
        %v2217 = vunpack.c.l.b16 %v2182
        %v2218 = vunpack.c.h.b16 %v2182
        %v2219 = vunpack.c.l.b16 %v2183
        %v2220 = vunpack.c.h.b16 %v2183
        %v2221 = vunpack.c.l.b16 %v2184
        %v2222 = vunpack.c.h.b16 %v2184
        %v2223 = vunpack.c.l.b16 %v2185
        %v2224 = vunpack.c.h.b16 %v2185
        %v2225 = vunpack.c.l.b16 %v2186
        %v2226 = vunpack.c.h.b16 %v2186
        %v2227 = vunpack.c.l.b16 %v2187
        %v2228 = vunpack.c.h.b16 %v2187
        %v2229 = vunpack.c.l.b16 %v2188
        %v2230 = vunpack.c.h.b16 %v2188
        %v2231 = vunpack.c.l.b16 %v2189
        %v2232 = vunpack.c.h.b16 %v2189
        %v2233 = vunpack.c.l.b16 %v2190
        %v2234 = vunpack.c.h.b16 %v2190
        %v2235 = vunpack.c.l.b16 %v2191
        %v2236 = vunpack.c.h.b16 %v2191
        %v2237 = vunpack.c.l.b16 %v2192
        %v2238 = vunpack.c.h.b16 %v2192
        %v2239 = vunpack.c.l.b16 %v2193
        %v2240 = vunpack.c.h.b16 %v2193
        %v2241 = vunpack.c.l.b16 %v2194
        %v2242 = vunpack.c.h.b16 %v2194
        %v2243 = vpack.c.b16 %v2211, %v2211
        %v2244 = vpack.c.b16 %v2212, %v2212
        %v2245 = vpack.c.b16 %v2213, %v2213
        %v2246 = vpack.c.b16 %v2214, %v2214
        %v2247 = vpack.c.b16 %v2215, %v2215
        %v2248 = vpack.c.b16 %v2216, %v2216
        %v2249 = vpack.c.b16 %v2217, %v2217
        %v2250 = vpack.c.b16 %v2218, %v2218
        %v2251 = vpack.c.b16 %v2219, %v2219
        %v2252 = vpack.c.b16 %v2220, %v2220
        %v2253 = vpack.c.b16 %v2221, %v2221
        %v2254 = vpack.c.b16 %v2222, %v2222
        %v2255 = vpack.c.b16 %v2223, %v2223
        %v2256 = vpack.c.b16 %v2224, %v2224
        %v2257 = vpack.c.b16 %v2225, %v2225
        %v2258 = vpack.c.b16 %v2226, %v2226
        %v2259 = vpack.c.b16 %v2227, %v2227
        %v2260 = vpack.c.b16 %v2228, %v2228
        %v2261 = vpack.c.b16 %v2229, %v2229
        %v2262 = vpack.c.b16 %v2230, %v2230
        %v2263 = vpack.c.b16 %v2231, %v2231
        %v2264 = vpack.c.b16 %v2232, %v2232
        %v2265 = vpack.c.b16 %v2233, %v2233
        %v2266 = vpack.c.b16 %v2234, %v2234
        %v2267 = vpack.c.b16 %v2235, %v2235
        %v2268 = vpack.c.b16 %v2236, %v2236
        %v2269 = vpack.c.b16 %v2237, %v2237
        %v2270 = vpack.c.b16 %v2238, %v2238
        %v2271 = vpack.c.b16 %v2239, %v2239
        %v2272 = vpack.c.b16 %v2240, %v2240
        %v2273 = vpack.c.b16 %v2241, %v2241
        %v2274 = vpack.c.b16 %v2242, %v2242
        %vm2307 = vcmask 257024
        %2308 = vst.msk [vmem:[%s350] sm:$0xf] %vm2307, %v2243
        %2309 = vst.msk [vmem:[%s350 + $0x4] sm:$0xf] %vm2307, %v2244
        %2310 = vst.msk [vmem:[%s350 + $0x8] sm:$0xf] %vm2307, %v2245
        %2311 = vst.msk [vmem:[%s350 + $0xc] sm:$0xf] %vm2307, %v2246
        %2312 = vst.msk [vmem:[%s350 + $0x10] sm:$0xf] %vm2307, %v2247
        %2313 = vst.msk [vmem:[%s350 + $0x14] sm:$0xf] %vm2307, %v2248
        %2314 = vst.msk [vmem:[%s350 + $0x18] sm:$0xf] %vm2307, %v2249
        %2315 = vst.msk [vmem:[%s350 + $0x1c] sm:$0xf] %vm2307, %v2250
        %2316 = vst.msk [vmem:[%s350 + $0x20] sm:$0xf] %vm2307, %v2251
        %2317 = vst.msk [vmem:[%s350 + $0x24] sm:$0xf] %vm2307, %v2252
        %2318 = vst.msk [vmem:[%s350 + $0x28] sm:$0xf] %vm2307, %v2253
        %2319 = vst.msk [vmem:[%s350 + $0x2c] sm:$0xf] %vm2307, %v2254
        %2320 = vst.msk [vmem:[%s350 + $0x30] sm:$0xf] %vm2307, %v2255
        %2321 = vst.msk [vmem:[%s350 + $0x34] sm:$0xf] %vm2307, %v2256
        %2322 = vst.msk [vmem:[%s350 + $0x38] sm:$0xf] %vm2307, %v2257
        %2323 = vst.msk [vmem:[%s350 + $0x3c] sm:$0xf] %vm2307, %v2258
        %2324 = vst.msk [vmem:[%s350 + $0x40] sm:$0xf] %vm2307, %v2259
        %2325 = vst.msk [vmem:[%s350 + $0x44] sm:$0xf] %vm2307, %v2260
        %2326 = vst.msk [vmem:[%s350 + $0x48] sm:$0xf] %vm2307, %v2261
        %2327 = vst.msk [vmem:[%s350 + $0x4c] sm:$0xf] %vm2307, %v2262
        %2328 = vst.msk [vmem:[%s350 + $0x50] sm:$0xf] %vm2307, %v2263
        %2329 = vst.msk [vmem:[%s350 + $0x54] sm:$0xf] %vm2307, %v2264
        %2330 = vst.msk [vmem:[%s350 + $0x58] sm:$0xf] %vm2307, %v2265
        %2331 = vst.msk [vmem:[%s350 + $0x5c] sm:$0xf] %vm2307, %v2266
        %2332 = vst.msk [vmem:[%s350 + $0x60] sm:$0xf] %vm2307, %v2267
        %2333 = vst.msk [vmem:[%s350 + $0x64] sm:$0xf] %vm2307, %v2268
        %2334 = vst.msk [vmem:[%s350 + $0x68] sm:$0xf] %vm2307, %v2269
        %2335 = vst.msk [vmem:[%s350 + $0x6c] sm:$0xf] %vm2307, %v2270
        %2336 = vst.msk [vmem:[%s350 + $0x70] sm:$0xf] %vm2307, %v2271
        %2337 = vst.msk [vmem:[%s350 + $0x74] sm:$0xf] %vm2307, %v2272
        %2338 = vst.msk [vmem:[%s350 + $0x78] sm:$0xf] %vm2307, %v2273
        %2339 = vst.msk [vmem:[%s350 + $0x7c] sm:$0xf] %vm2307, %v2274
        %s2340 = sand.u32 %s228, 1
        %s2341 = scalar_lea.sflag [#allocation4], %s2340
        %s2342 = sand.u32 %s228, 1
        %s2343 = smul.addr %s2342, 128
        %s2344 = scalar_lea.vmem [#allocation5], %s2343
        // Predicated region
        $region61: #{tpu_custom_call.1} parent=55 // pred_check
          %p2345 = pneg %p238
        $region62: #{tpu_custom_call.1} parent=55 // pred_check_branch
          %2347 = sbr.rel (%p2345) target = $region64
        $region63: #{tpu_custom_call.1} parent=55 // pred_region
          %s2349 = ssub.s32 2048, 2048
          %2350 = vsyncadd %s2341, %s2349
          %s2351 = smul.addr %s26, 32
          %s2352 = smul.addr %s2351, 64
          %s2353 = scalar_lea.hbm %s9, %s2352
          %s2354 = sshll.u32 %s2344, 4
          %s2355 = int_to_ptr.vmem [resolvable:$true] %s2354
          %2360 = dma.vmem_to_hbm [thread:$0]  %s2355, 2048, %s2353, %s2341, 64, 64, 4
        $region64: #{tpu_custom_call.1} parent=55 // pred_fallthru
          _
      $region56: #{tpu_custom_call.1} parent=5 // pred_fallthru
        _
      %p2361 = scmp.le.s32.totalorder 2, %s21
      // Predicated region
      $region65: #{tpu_custom_call.1} parent=5 // pred_check
        %p2362 = pneg %p2361
      $region66: #{tpu_custom_call.1} parent=5 // pred_check_branch
        %2364 = sbr.rel (%p2362) target = $region68
      $region67: #{tpu_custom_call.1} parent=5 // pred_region
        %s2365 = ssub.s32 %s21, 2
        // Predicated region
        $region69: #{tpu_custom_call.1} parent=67 // pred_check
          %p2366 = pneg %p244
        $region70: #{tpu_custom_call.1} parent=67 // pred_check_branch
          %2368 = sbr.rel (%p2366) target = $region72
        $region71: #{tpu_custom_call.1} parent=67 // pred_region
          %s2369 = sand.u32 %s229, 1
          %s2370 = scalar_lea.sflag [#allocation4], %s2369
          %s2371 = sand.u32 %s229, 1
          %s2372 = smul.addr %s2371, 128
          %s2373 = scalar_lea.vmem [#allocation5], %s2372
          %2374 = dma.done %s2370, 2048
        $region72: #{tpu_custom_call.1} parent=67 // pred_fallthru
          _
      $region68: #{tpu_custom_call.1} parent=5 // pred_fallthru
        _
    $region6: #{tpu_custom_call.1} parent=1 // loop_footer
      %s25 = sadd.s32 1, %s21
    $region7: #{tpu_custom_call.1} parent=1 // loop_footer_branch
      %20 = sbr.rel target = $region3
    $region8: #{tpu_custom_call.1} parent=1 // loop_exit
      _
    %2375 = vsyncpa [#allocation3], 1
    %s2376 = scalar_lea.sflag [#allocation3], 1
    %2377 = vsyncpa %s2376, 1
    %2378 = vsyncpa [#allocation4], 1
    %s2379 = scalar_lea.sflag [#allocation4], 1
    %2380 = vsyncpa %s2379, 1

</llo_original>
